<compile_context>
chip_gen: v7x
topology: tpu7x:2x2x1
jax: 0.10.0
libtpu: 0.0.40
codegen_flags: <defaults>
</compile_context>

<pallas_src>
import functools

import jax
import jax.numpy as jnp
from jax.experimental import pallas as pl
from jax.experimental.pallas import tpu as pltpu

CHANNELS = [3, 64, 128, 256, 512, 256, 128]
BN_EPS = 1e-5


def _encoder_kernel(x_ref,
                    w1, w2, w3, w4, w5, w6,
                    b1, b2, b3, b4, b5, b6,
                    o_ref,
                    *, n_points, n_pad, tn, tiles_per_split):
    s_idx = pl.program_id(1)     # point-split index (parallel; v7x B==1 escape hatch)
    t_idx = pl.program_id(2)     # point-tile index inside the split (arbitrary)

    # ---- layer 1 (3 -> 64) on the VPU in f32 --------------------------------
    # K=3 would waste MXU issue slots; three broadcast FMAs ride the VPU and
    # keep the raw coordinates at full precision.
    x = x_ref[0]                                                 # (tn, 3) f32
    h = (x[:, 0:1] * w1[0:1, :] + x[:, 1:2] * w1[1:2, :]
         + x[:, 2:3] * w1[2:3, :] + b1[...])
    h = jnp.maximum(h, 0.0).astype(jnp.bfloat16)                 # (tn, 64) bf16

    # ---- layers 2..6 on the MXU: bf16 activations/weights, f32 accumulate ---
    def layer(hh, w, b, relu=True, keep_f32=False):
        y = jnp.dot(hh, w[...], preferred_element_type=jnp.float32) + b[...]
        if relu:
            y = jnp.maximum(y, 0.0)
        return y if keep_f32 else y.astype(jnp.bfloat16)

    h = layer(h, w2, b2)                                         # (tn, 128)
    h = layer(h, w3, b3)                                         # (tn, 256)
    h = layer(h, w4, b4)                                         # (tn, 512)
    h = layer(h, w5, b5)                                         # (tn, 256)
    h = layer(h, w6, b6, relu=False, keep_f32=True)              # (tn, 128) f32

    # ---- running max over point tiles (AdaptiveMaxPool1d(1)) ----------------
    def emit(hh):
        m = jnp.max(hh, axis=0, keepdims=True).reshape(o_ref.shape)  # (1,1,1,128)

        @pl.when(t_idx == 0)
        def _():
            o_ref[...] = m                       # first tile: direct write, no init

        @pl.when(t_idx > 0)
        def _():
            o_ref[...] = jnp.maximum(o_ref[...], m)

    if n_pad > n_points:
        # Only the tail tile pays the iota/compare/select over (tn, 128).
        start = (s_idx * tiles_per_split + t_idx) * tn
        is_tail = start + tn > n_points

        @pl.when(is_tail)
        def _():
            rows = start + jax.lax.broadcasted_iota(jnp.int32, (tn, 1), 0)
            emit(jnp.where(rows < n_points, h, -jnp.inf))

        @pl.when(jnp.logical_not(is_tail))
        def _():
            emit(h)
    else:
        emit(h)


def encoder_forward(x, weights, scales, biases, *, tn=1024, nsplit=1):
    """x: (B, N, 3) float32.  Returns (B, 128) float32.

    tn:     point-tile size (sweep 512-2048; VMEM footprint is a few MiB so no
            vmem_limit override is needed on v5e/v6e/v7x at these sizes).
    nsplit: parallel split over the point axis.  Leave at 1; set 2 on v7x only
            when B == 1 so the second TensorCore gets work.
    """
    B, N, cin = x.shape
    assert cin == CHANNELS[0]
    cout = CHANNELS[-1]

    # ---- trace-time parameter prep ------------------------------------------
    # Fold BN scale into the conv weight columns.  Layer 1 stays f32 (VPU path
    # in the kernel); layers 2..6 cast to bf16 (MXU-native, halves weight DMA).
    w_folded = []
    for i, (w, s) in enumerate(zip(weights, scales)):
        wf = w * s                                   # (cin_i, cout_i), column scale
        w_folded.append(wf.astype(jnp.float32 if i == 0 else jnp.bfloat16))
    b_list = [b.astype(jnp.float32) for b in biases]
    # TODO(synk): optional fp8(e4m3) weights for the 256->512->256 middle layers
    # on v7x only (further ~2x MXU throughput); not applied to keep portability.

    # ---- tiling --------------------------------------------------------------
    tn = max(8, min(int(tn), -(-N // nsplit)))       # don't over-tile small N
    tn = ((tn + 7) // 8) * 8                         # sublane-align
    tiles_per_split = -(-N // (nsplit * tn))
    n_pad = nsplit * tiles_per_split * tn

    xp = jnp.pad(x, ((0, 0), (0, n_pad - N), (0, 0)))

    grid = (B, nsplit, tiles_per_split)

    w_specs = [pl.BlockSpec(wv.shape, lambda b, s, t: (0, 0)) for wv in w_folded]
    b_specs = [pl.BlockSpec(bv.shape, lambda b, s, t: (0, 0)) for bv in b_list]
    # Weight/bias blocks are constant across the grid (no re-fetch); default
    # double buffering costs < 1 MiB in bf16, so no Buffered(1) override.

    kernel = functools.partial(_encoder_kernel, n_points=N, n_pad=n_pad,
                               tn=tn, tiles_per_split=tiles_per_split)

    flops = 2 * B * N * sum(CHANNELS[i] * CHANNELS[i + 1] for i in range(6))
    bytes_accessed = (int(xp.size) * 4
                      + sum(int(wv.size) * wv.dtype.itemsize for wv in w_folded)
                      + sum(int(bv.size) * 4 for bv in b_list)
                      + B * nsplit * cout * 4)

    out4d = pl.pallas_call(
        kernel,
        out_shape=jax.ShapeDtypeStruct((B, nsplit, 1, cout), jnp.float32),
        grid_spec=pltpu.PrefetchScalarGridSpec(
            num_scalar_prefetch=0,
            grid=grid,
            in_specs=[pl.BlockSpec((1, tn, cin),
                                   lambda b, s, t: (b, s * tiles_per_split + t, 0))]
                     + w_specs + b_specs,
            out_specs=pl.BlockSpec((1, 1, 1, cout), lambda b, s, t: (b, s, 0, 0)),
        ),
        compiler_params=pltpu.CompilerParams(
            dimension_semantics=("parallel", "parallel", "arbitrary")),
        cost_estimate=pl.CostEstimate(flops=flops, transcendentals=0,
                                      bytes_accessed=bytes_accessed),
    )(xp, *w_folded, *b_list)

    # Reduce the per-split partial maxima -> (B, 128), i.e. output.view(-1, C).
    # (An all-padding split contributes -inf, absorbed as long as N > 0.)
    return jnp.max(out4d[:, :, 0, :], axis=1)


def init_params(key):
    """Deterministic synthetic parameters (eval-mode BatchNorm as scale/bias)."""
    weights, scales, biases = [], [], []
    for i in range(6):
        cin, cout = CHANNELS[i], CHANNELS[i + 1]
        key, kw, kg, kb, km, kv = jax.random.split(key, 6)
        # Conv1d weight (out, in, 1) in torch -> stored transposed as (in, out).
        w = jax.random.normal(kw, (cin, cout), jnp.float32) * (1.0 / jnp.sqrt(cin))
        gamma = 1.0 + 0.1 * jax.random.normal(kg, (1, cout), jnp.float32)
        beta = 0.1 * jax.random.normal(kb, (1, cout), jnp.float32)
        mean = 0.1 * jax.random.normal(km, (1, cout), jnp.float32)
        var = jax.nn.softplus(jax.random.normal(kv, (1, cout), jnp.float32)) + 0.5
        scale = gamma / jnp.sqrt(var + BN_EPS)
        bias = beta - mean * scale
        weights.append(w)
        scales.append(scale)
        biases.append(bias)
    return weights, scales, biases


if __name__ == "__main__":
    key = jax.random.PRNGKey(0)
    kx, kp = jax.random.split(key)

    B, N = 2, 100                      # torch input would be (B, 3, N); we use (B, N, 3)
    x = jax.random.normal(kx, (B, N, CHANNELS[0]), jnp.float32)
    weights, scales, biases = init_params(kp)

    # Plain-JAX f32 reference of the same math.
    h = x
    for i in range(6):
        h = (h @ weights[i]) * scales[i] + biases[i]
        if i < 5:
            h = jnp.maximum(h, 0.0)
    ref = jnp.max(h, axis=1)           # AdaptiveMaxPool1d(1) over points

    # Default config: single split, tile capped/aligned to the point count.
    out = jax.block_until_ready(encoder_forward(x, weights, scales, biases))
    assert out.shape == (B, CHANNELS[-1]), out.shape
    # f32 layer 1 + bf16 layers 2..6 (f32 accumulation): tolerance tightened
    # vs. the previous all-bf16 version.
    assert jnp.allclose(out, ref, atol=3e-2, rtol=3e-2), \
        float(jnp.max(jnp.abs(out - ref)))

    # Dual-split config: exercises multi-tile running max, tail-tile padding
    # mask and per-split partial-max reduction (v7x B==1 escape hatch).
    out2 = jax.block_until_ready(
        encoder_forward(x, weights, scales, biases, tn=32, nsplit=2))
    assert out2.shape == (B, CHANNELS[-1]), out2.shape
    assert jnp.allclose(out2, ref, atol=3e-2, rtol=3e-2), \
        float(jnp.max(jnp.abs(out2 - ref)))

    print("KERNEL_OK")
</pallas_src>

<mosaic_0001>
module attributes {stable_mosaic.version = 11 : i64} {
  func.func @_encoder_kernel(%arg0: i32, %arg1: i32, %arg2: i32, %arg3: memref<1x104x3xf32, #tpu.memory_space<vmem>>, %arg4: memref<3x64xf32, #tpu.memory_space<vmem>>, %arg5: memref<64x128xbf16, #tpu.memory_space<vmem>>, %arg6: memref<128x256xbf16, #tpu.memory_space<vmem>>, %arg7: memref<256x512xbf16, #tpu.memory_space<vmem>>, %arg8: memref<512x256xbf16, #tpu.memory_space<vmem>>, %arg9: memref<256x128xbf16, #tpu.memory_space<vmem>>, %arg10: memref<1x64xf32, #tpu.memory_space<vmem>>, %arg11: memref<1x128xf32, #tpu.memory_space<vmem>>, %arg12: memref<1x256xf32, #tpu.memory_space<vmem>>, %arg13: memref<1x512xf32, #tpu.memory_space<vmem>>, %arg14: memref<1x256xf32, #tpu.memory_space<vmem>>, %arg15: memref<1x128xf32, #tpu.memory_space<vmem>>, %arg16: memref<1x1x1x128xf32, #tpu.memory_space<vmem>>) attributes {dimension_semantics = [#tpu.dimension_semantics<parallel>, #tpu.dimension_semantics<parallel>, #tpu.dimension_semantics<arbitrary>], iteration_bounds = array<i64: 2, 1, 1>, scalar_prefetch = 0 : i64, scratch_operands = 0 : i64, tpu.core_type = #tpu.core_type<tc>, window_params = [{transform_indices = @transform_0, window_bounds = array<i64: 1, 104, 3>}, {pipeline_mode = #tpu.pipeline_mode<synchronous>, transform_indices = @transform_1, window_bounds = array<i64: 3, 64>}, {pipeline_mode = #tpu.pipeline_mode<synchronous>, transform_indices = @transform_2, window_bounds = array<i64: 64, 128>}, {pipeline_mode = #tpu.pipeline_mode<synchronous>, transform_indices = @transform_3, window_bounds = array<i64: 128, 256>}, {pipeline_mode = #tpu.pipeline_mode<synchronous>, transform_indices = @transform_4, window_bounds = array<i64: 256, 512>}, {pipeline_mode = #tpu.pipeline_mode<synchronous>, transform_indices = @transform_5, window_bounds = array<i64: 512, 256>}, {pipeline_mode = #tpu.pipeline_mode<synchronous>, transform_indices = @transform_6, window_bounds = array<i64: 256, 128>}, {pipeline_mode = #tpu.pipeline_mode<synchronous>, transform_indices = @transform_7, window_bounds = array<i64: 1, 64>}, {pipeline_mode = #tpu.pipeline_mode<synchronous>, transform_indices = @transform_8, window_bounds = array<i64: 1, 128>}, {pipeline_mode = #tpu.pipeline_mode<synchronous>, transform_indices = @transform_9, window_bounds = array<i64: 1, 256>}, {pipeline_mode = #tpu.pipeline_mode<synchronous>, transform_indices = @transform_10, window_bounds = array<i64: 1, 512>}, {pipeline_mode = #tpu.pipeline_mode<synchronous>, transform_indices = @transform_11, window_bounds = array<i64: 1, 256>}, {pipeline_mode = #tpu.pipeline_mode<synchronous>, transform_indices = @transform_12, window_bounds = array<i64: 1, 128>}, {transform_indices = @transform_13, window_bounds = array<i64: 1, 1, 1, 128>}]} {
    %c0 = arith.constant 0 : index
    %c0_0 = arith.constant 0 : index
    %c0_1 = arith.constant 0 : index
    %0 = vector.load %arg3[%c0, %c0_0, %c0_1] : memref<1x104x3xf32, #tpu.memory_space<vmem>>, vector<1x104x3xf32>
    %1 = vector.shape_cast %0 : vector<1x104x3xf32> to vector<104x3xf32>
    %2 = vector.extract_strided_slice %1 {offsets = [0, 0], sizes = [104, 1], strides = [1, 1]} : vector<104x3xf32> to vector<104x1xf32>
    %c0_2 = arith.constant 0 : index
    %c0_3 = arith.constant 0 : index
    %3 = vector.load %arg4[%c0_2, %c0_3] : memref<3x64xf32, #tpu.memory_space<vmem>>, vector<1x64xf32>
    %4 = vector.broadcast %2 : vector<104x1xf32> to vector<104x64xf32>
    %5 = vector.broadcast %3 : vector<1x64xf32> to vector<104x64xf32>
    %6 = arith.mulf %4, %5 : vector<104x64xf32>
    %7 = vector.extract_strided_slice %1 {offsets = [0, 1], sizes = [104, 1], strides = [1, 1]} : vector<104x3xf32> to vector<104x1xf32>
    %c1 = arith.constant 1 : index
    %c0_4 = arith.constant 0 : index
    %8 = vector.load %arg4[%c1, %c0_4] : memref<3x64xf32, #tpu.memory_space<vmem>>, vector<1x64xf32>
    %9 = vector.broadcast %7 : vector<104x1xf32> to vector<104x64xf32>
    %10 = vector.broadcast %8 : vector<1x64xf32> to vector<104x64xf32>
    %11 = arith.mulf %9, %10 : vector<104x64xf32>
    %12 = arith.addf %6, %11 : vector<104x64xf32>
    %13 = vector.extract_strided_slice %1 {offsets = [0, 2], sizes = [104, 1], strides = [1, 1]} : vector<104x3xf32> to vector<104x1xf32>
    %c2 = arith.constant 2 : index
    %c0_5 = arith.constant 0 : index
    %14 = vector.load %arg4[%c2, %c0_5] : memref<3x64xf32, #tpu.memory_space<vmem>>, vector<1x64xf32>
    %15 = vector.broadcast %13 : vector<104x1xf32> to vector<104x64xf32>
    %16 = vector.broadcast %14 : vector<1x64xf32> to vector<104x64xf32>
    %17 = arith.mulf %15, %16 : vector<104x64xf32>
    %18 = arith.addf %12, %17 : vector<104x64xf32>
    %c0_6 = arith.constant 0 : index
    %c0_7 = arith.constant 0 : index
    %19 = vector.load %arg10[%c0_6, %c0_7] : memref<1x64xf32, #tpu.memory_space<vmem>>, vector<1x64xf32>
    %20 = vector.broadcast %19 : vector<1x64xf32> to vector<104x64xf32>
    %21 = arith.addf %18, %20 : vector<104x64xf32>
    %cst = arith.constant 0.000000e+00 : f32
    %22 = vector.broadcast %cst : f32 to vector<104x64xf32>
    %23 = arith.maximumf %21, %22 : vector<104x64xf32>
    %24 = arith.truncf %23 : vector<104x64xf32> to vector<104x64xbf16>
    %c0_8 = arith.constant 0 : index
    %c0_9 = arith.constant 0 : index
    %25 = vector.load %arg5[%c0_8, %c0_9] : memref<64x128xbf16, #tpu.memory_space<vmem>>, vector<64x128xbf16>
    %cst_10 = arith.constant dense<0.000000e+00> : vector<104x128xf32>
    %26 = tpu.matmul %24, %25, %cst_10 {dimension_numbers = #tpu.dot_dimension_numbers<[1], [0], [0], [1], [0, 0, 1, 1], [], []>} : vector<104x64xbf16>, vector<64x128xbf16>, vector<104x128xf32> -> vector<104x128xf32>
    %c0_11 = arith.constant 0 : index
    %c0_12 = arith.constant 0 : index
    %27 = vector.load %arg11[%c0_11, %c0_12] : memref<1x128xf32, #tpu.memory_space<vmem>>, vector<1x128xf32>
    %28 = vector.broadcast %27 : vector<1x128xf32> to vector<104x128xf32>
    %29 = arith.addf %26, %28 : vector<104x128xf32>
    %cst_13 = arith.constant 0.000000e+00 : f32
    %30 = vector.broadcast %cst_13 : f32 to vector<104x128xf32>
    %31 = arith.maximumf %29, %30 : vector<104x128xf32>
    %32 = arith.truncf %31 : vector<104x128xf32> to vector<104x128xbf16>
    %c0_14 = arith.constant 0 : index
    %c0_15 = arith.constant 0 : index
    %33 = vector.load %arg6[%c0_14, %c0_15] : memref<128x256xbf16, #tpu.memory_space<vmem>>, vector<128x256xbf16>
    %cst_16 = arith.constant dense<0.000000e+00> : vector<104x256xf32>
    %34 = tpu.matmul %32, %33, %cst_16 {dimension_numbers = #tpu.dot_dimension_numbers<[1], [0], [0], [1], [0, 0, 1, 1], [], []>} : vector<104x128xbf16>, vector<128x256xbf16>, vector<104x256xf32> -> vector<104x256xf32>
    %c0_17 = arith.constant 0 : index
    %c0_18 = arith.constant 0 : index
    %35 = vector.load %arg12[%c0_17, %c0_18] : memref<1x256xf32, #tpu.memory_space<vmem>>, vector<1x256xf32>
    %36 = vector.broadcast %35 : vector<1x256xf32> to vector<104x256xf32>
    %37 = arith.addf %34, %36 : vector<104x256xf32>
    %cst_19 = arith.constant 0.000000e+00 : f32
    %38 = vector.broadcast %cst_19 : f32 to vector<104x256xf32>
    %39 = arith.maximumf %37, %38 : vector<104x256xf32>
    %40 = arith.truncf %39 : vector<104x256xf32> to vector<104x256xbf16>
    %c0_20 = arith.constant 0 : index
    %c0_21 = arith.constant 0 : index
    %41 = vector.load %arg7[%c0_20, %c0_21] : memref<256x512xbf16, #tpu.memory_space<vmem>>, vector<256x512xbf16>
    %cst_22 = arith.constant dense<0.000000e+00> : vector<104x512xf32>
    %42 = tpu.matmul %40, %41, %cst_22 {dimension_numbers = #tpu.dot_dimension_numbers<[1], [0], [0], [1], [0, 0, 1, 1], [], []>} : vector<104x256xbf16>, vector<256x512xbf16>, vector<104x512xf32> -> vector<104x512xf32>
    %c0_23 = arith.constant 0 : index
    %c0_24 = arith.constant 0 : index
    %43 = vector.load %arg13[%c0_23, %c0_24] : memref<1x512xf32, #tpu.memory_space<vmem>>, vector<1x512xf32>
    %44 = vector.broadcast %43 : vector<1x512xf32> to vector<104x512xf32>
    %45 = arith.addf %42, %44 : vector<104x512xf32>
    %cst_25 = arith.constant 0.000000e+00 : f32
    %46 = vector.broadcast %cst_25 : f32 to vector<104x512xf32>
    %47 = arith.maximumf %45, %46 : vector<104x512xf32>
    %48 = arith.truncf %47 : vector<104x512xf32> to vector<104x512xbf16>
    %c0_26 = arith.constant 0 : index
    %c0_27 = arith.constant 0 : index
    %49 = vector.load %arg8[%c0_26, %c0_27] : memref<512x256xbf16, #tpu.memory_space<vmem>>, vector<512x256xbf16>
    %cst_28 = arith.constant dense<0.000000e+00> : vector<104x256xf32>
    %50 = tpu.matmul %48, %49, %cst_28 {dimension_numbers = #tpu.dot_dimension_numbers<[1], [0], [0], [1], [0, 0, 1, 1], [], []>} : vector<104x512xbf16>, vector<512x256xbf16>, vector<104x256xf32> -> vector<104x256xf32>
    %c0_29 = arith.constant 0 : index
    %c0_30 = arith.constant 0 : index
    %51 = vector.load %arg14[%c0_29, %c0_30] : memref<1x256xf32, #tpu.memory_space<vmem>>, vector<1x256xf32>
    %52 = vector.broadcast %51 : vector<1x256xf32> to vector<104x256xf32>
    %53 = arith.addf %50, %52 : vector<104x256xf32>
    %cst_31 = arith.constant 0.000000e+00 : f32
    %54 = vector.broadcast %cst_31 : f32 to vector<104x256xf32>
    %55 = arith.maximumf %53, %54 : vector<104x256xf32>
    %56 = arith.truncf %55 : vector<104x256xf32> to vector<104x256xbf16>
    %c0_32 = arith.constant 0 : index
    %c0_33 = arith.constant 0 : index
    %57 = vector.load %arg9[%c0_32, %c0_33] : memref<256x128xbf16, #tpu.memory_space<vmem>>, vector<256x128xbf16>
    %cst_34 = arith.constant dense<0.000000e+00> : vector<104x128xf32>
    %58 = tpu.matmul %56, %57, %cst_34 {dimension_numbers = #tpu.dot_dimension_numbers<[1], [0], [0], [1], [0, 0, 1, 1], [], []>} : vector<104x256xbf16>, vector<256x128xbf16>, vector<104x128xf32> -> vector<104x128xf32>
    %c0_35 = arith.constant 0 : index
    %c0_36 = arith.constant 0 : index
    %59 = vector.load %arg15[%c0_35, %c0_36] : memref<1x128xf32, #tpu.memory_space<vmem>>, vector<1x128xf32>
    %60 = vector.broadcast %59 : vector<1x128xf32> to vector<104x128xf32>
    %61 = arith.addf %58, %60 : vector<104x128xf32>
    %c1_i32 = arith.constant 1 : i32
    %62 = arith.muli %arg1, %c1_i32 : i32
    %63 = arith.addi %62, %arg2 : i32
    %c104_i32 = arith.constant 104 : i32
    %64 = arith.muli %63, %c104_i32 : i32
    %c104_i32_37 = arith.constant 104 : i32
    %65 = arith.addi %64, %c104_i32_37 : i32
    %c100_i32 = arith.constant 100 : i32
    %66 = arith.cmpi sgt, %65, %c100_i32 : i32
    %67 = arith.extui %66 : i1 to i32
    %c0_i32 = arith.constant 0 : i32
    %68 = arith.cmpi ne, %67, %c0_i32 : i32
    scf.if %68 {
      %72 = tpu.iota {dimensions = array<i32: 0>} : vector<104x1xi32>
      %73 = vector.broadcast %64 : i32 to vector<104x1xi32>
      %74 = arith.addi %73, %72 : vector<104x1xi32>
      %c100_i32_39 = arith.constant 100 : i32
      %75 = vector.broadcast %c100_i32_39 : i32 to vector<104x1xi32>
      %76 = arith.cmpi slt, %74, %75 : vector<104x1xi32>
      %cst_40 = arith.constant 0xFF800000 : f32
      %77 = vector.shape_cast %76 : vector<104x1xi1> to vector<104x1xi1>
      %78 = vector.broadcast %77 : vector<104x1xi1> to vector<104x128xi1>
      %79 = vector.broadcast %cst_40 : f32 to vector<104x128xf32>
      %80 = arith.select %78, %61, %79 : vector<104x128xi1>, vector<104x128xf32>
      %cst_41 = arith.constant dense<0xFF800000> : vector<128xf32>
      %81 = vector.multi_reduction <maximumf>, %80, %cst_41 [0] : vector<104x128xf32> to vector<128xf32>
      %82 = vector.shape_cast %81 : vector<128xf32> to vector<1x128xf32>
      %83 = vector.shape_cast %82 : vector<1x128xf32> to vector<1x1x1x128xf32>
      %c0_i32_42 = arith.constant 0 : i32
      %84 = arith.cmpi eq, %arg2, %c0_i32_42 : i32
      %85 = arith.extui %84 : i1 to i32
      %c0_i32_43 = arith.constant 0 : i32
      %86 = arith.cmpi ne, %85, %c0_i32_43 : i32
      scf.if %86 {
        %c0_46 = arith.constant 0 : index
        %c0_47 = arith.constant 0 : index
        %c0_48 = arith.constant 0 : index
        %c0_49 = arith.constant 0 : index
        %90 = vector.load %arg16[%c0_46, %c0_47, %c0_48, %c0_49] : memref<1x1x1x128xf32, #tpu.memory_space<vmem>>, vector<1x1x1x128xf32>
        tpu.vector_store %arg16[%c0_46, %c0_47, %c0_48, %c0_49], %83 {strides = array<i32>} : memref<1x1x1x128xf32, #tpu.memory_space<vmem>>, vector<1x1x1x128xf32>,
      } else {
      }
      %c0_i32_44 = arith.constant 0 : i32
      %87 = arith.cmpi sgt, %arg2, %c0_i32_44 : i32
      %88 = arith.extui %87 : i1 to i32
      %c0_i32_45 = arith.constant 0 : i32
      %89 = arith.cmpi ne, %88, %c0_i32_45 : i32
      scf.if %89 {
        %c0_46 = arith.constant 0 : index
        %c0_47 = arith.constant 0 : index
        %c0_48 = arith.constant 0 : index
        %c0_49 = arith.constant 0 : index
        %90 = vector.load %arg16[%c0_46, %c0_47, %c0_48, %c0_49] : memref<1x1x1x128xf32, #tpu.memory_space<vmem>>, vector<1x1x1x128xf32>
        %91 = arith.maximumf %90, %83 : vector<1x1x1x128xf32>
        %c0_50 = arith.constant 0 : index
        %c0_51 = arith.constant 0 : index
        %c0_52 = arith.constant 0 : index
        %c0_53 = arith.constant 0 : index
        %92 = vector.load %arg16[%c0_50, %c0_51, %c0_52, %c0_53] : memref<1x1x1x128xf32, #tpu.memory_space<vmem>>, vector<1x1x1x128xf32>
        tpu.vector_store %arg16[%c0_50, %c0_51, %c0_52, %c0_53], %91 {strides = array<i32>} : memref<1x1x1x128xf32, #tpu.memory_space<vmem>>, vector<1x1x1x128xf32>,
      } else {
      }
    } else {
    }
    %true = arith.constant true
    %69 = arith.xori %66, %true : i1
    %70 = arith.extui %69 : i1 to i32
    %c0_i32_38 = arith.constant 0 : i32
    %71 = arith.cmpi ne, %70, %c0_i32_38 : i32
    scf.if %71 {
      %cst_39 = arith.constant dense<0xFF800000> : vector<128xf32>
      %72 = vector.multi_reduction <maximumf>, %61, %cst_39 [0] : vector<104x128xf32> to vector<128xf32>
      %73 = vector.shape_cast %72 : vector<128xf32> to vector<1x128xf32>
      %74 = vector.shape_cast %73 : vector<1x128xf32> to vector<1x1x1x128xf32>
      %c0_i32_40 = arith.constant 0 : i32
      %75 = arith.cmpi eq, %arg2, %c0_i32_40 : i32
      %76 = arith.extui %75 : i1 to i32
      %c0_i32_41 = arith.constant 0 : i32
      %77 = arith.cmpi ne, %76, %c0_i32_41 : i32
      scf.if %77 {
        %c0_44 = arith.constant 0 : index
        %c0_45 = arith.constant 0 : index
        %c0_46 = arith.constant 0 : index
        %c0_47 = arith.constant 0 : index
        %81 = vector.load %arg16[%c0_44, %c0_45, %c0_46, %c0_47] : memref<1x1x1x128xf32, #tpu.memory_space<vmem>>, vector<1x1x1x128xf32>
        tpu.vector_store %arg16[%c0_44, %c0_45, %c0_46, %c0_47], %74 {strides = array<i32>} : memref<1x1x1x128xf32, #tpu.memory_space<vmem>>, vector<1x1x1x128xf32>,
      } else {
      }
      %c0_i32_42 = arith.constant 0 : i32
      %78 = arith.cmpi sgt, %arg2, %c0_i32_42 : i32
      %79 = arith.extui %78 : i1 to i32
      %c0_i32_43 = arith.constant 0 : i32
      %80 = arith.cmpi ne, %79, %c0_i32_43 : i32
      scf.if %80 {
        %c0_44 = arith.constant 0 : index
        %c0_45 = arith.constant 0 : index
        %c0_46 = arith.constant 0 : index
        %c0_47 = arith.constant 0 : index
        %81 = vector.load %arg16[%c0_44, %c0_45, %c0_46, %c0_47] : memref<1x1x1x128xf32, #tpu.memory_space<vmem>>, vector<1x1x1x128xf32>
        %82 = arith.maximumf %81, %74 : vector<1x1x1x128xf32>
        %c0_48 = arith.constant 0 : index
        %c0_49 = arith.constant 0 : index
        %c0_50 = arith.constant 0 : index
        %c0_51 = arith.constant 0 : index
        %83 = vector.load %arg16[%c0_48, %c0_49, %c0_50, %c0_51] : memref<1x1x1x128xf32, #tpu.memory_space<vmem>>, vector<1x1x1x128xf32>
        tpu.vector_store %arg16[%c0_48, %c0_49, %c0_50, %c0_51], %82 {strides = array<i32>} : memref<1x1x1x128xf32, #tpu.memory_space<vmem>>, vector<1x1x1x128xf32>,
      } else {
      }
    } else {
    }
    return
  }
  func.func @transform_0(%arg0: i32, %arg1: i32, %arg2: i32) -> (i32, i32, i32) {
    %c1_i32 = arith.constant 1 : i32
    %0 = arith.muli %arg1, %c1_i32 : i32
    %1 = arith.addi %0, %arg2 : i32
    %c0_i32 = arith.constant 0 : i32
    %c0_i32_0 = arith.constant 0 : i32
    return %arg0, %1, %c0_i32 : i32, i32, i32
  }
  func.func @transform_1(%arg0: i32, %arg1: i32, %arg2: i32) -> (i32, i32) {
    %c0_i32 = arith.constant 0 : i32
    %c0_i32_0 = arith.constant 0 : i32
    %c0_i32_1 = arith.constant 0 : i32
    return %c0_i32, %c0_i32_0 : i32, i32
  }
  func.func @transform_2(%arg0: i32, %arg1: i32, %arg2: i32) -> (i32, i32) {
    %c0_i32 = arith.constant 0 : i32
    %c0_i32_0 = arith.constant 0 : i32
    %c0_i32_1 = arith.constant 0 : i32
    return %c0_i32, %c0_i32_0 : i32, i32
  }
  func.func @transform_3(%arg0: i32, %arg1: i32, %arg2: i32) -> (i32, i32) {
    %c0_i32 = arith.constant 0 : i32
    %c0_i32_0 = arith.constant 0 : i32
    %c0_i32_1 = arith.constant 0 : i32
    return %c0_i32, %c0_i32_0 : i32, i32
  }
  func.func @transform_4(%arg0: i32, %arg1: i32, %arg2: i32) -> (i32, i32) {
    %c0_i32 = arith.constant 0 : i32
    %c0_i32_0 = arith.constant 0 : i32
    %c0_i32_1 = arith.constant 0 : i32
    return %c0_i32, %c0_i32_0 : i32, i32
  }
  func.func @transform_5(%arg0: i32, %arg1: i32, %arg2: i32) -> (i32, i32) {
    %c0_i32 = arith.constant 0 : i32
    %c0_i32_0 = arith.constant 0 : i32
    %c0_i32_1 = arith.constant 0 : i32
    return %c0_i32, %c0_i32_0 : i32, i32
  }
  func.func @transform_6(%arg0: i32, %arg1: i32, %arg2: i32) -> (i32, i32) {
    %c0_i32 = arith.constant 0 : i32
    %c0_i32_0 = arith.constant 0 : i32
    %c0_i32_1 = arith.constant 0 : i32
    return %c0_i32, %c0_i32_0 : i32, i32
  }
  func.func @transform_7(%arg0: i32, %arg1: i32, %arg2: i32) -> (i32, i32) {
    %c0_i32 = arith.constant 0 : i32
    %c0_i32_0 = arith.constant 0 : i32
    %c0_i32_1 = arith.constant 0 : i32
    return %c0_i32, %c0_i32_0 : i32, i32
  }
  func.func @transform_8(%arg0: i32, %arg1: i32, %arg2: i32) -> (i32, i32) {
    %c0_i32 = arith.constant 0 : i32
    %c0_i32_0 = arith.constant 0 : i32
    %c0_i32_1 = arith.constant 0 : i32
    return %c0_i32, %c0_i32_0 : i32, i32
  }
  func.func @transform_9(%arg0: i32, %arg1: i32, %arg2: i32) -> (i32, i32) {
    %c0_i32 = arith.constant 0 : i32
    %c0_i32_0 = arith.constant 0 : i32
    %c0_i32_1 = arith.constant 0 : i32
    return %c0_i32, %c0_i32_0 : i32, i32
  }
  func.func @transform_10(%arg0: i32, %arg1: i32, %arg2: i32) -> (i32, i32) {
    %c0_i32 = arith.constant 0 : i32
    %c0_i32_0 = arith.constant 0 : i32
    %c0_i32_1 = arith.constant 0 : i32
    return %c0_i32, %c0_i32_0 : i32, i32
  }
  func.func @transform_11(%arg0: i32, %arg1: i32, %arg2: i32) -> (i32, i32) {
    %c0_i32 = arith.constant 0 : i32
    %c0_i32_0 = arith.constant 0 : i32
    %c0_i32_1 = arith.constant 0 : i32
    return %c0_i32, %c0_i32_0 : i32, i32
  }
  func.func @transform_12(%arg0: i32, %arg1: i32, %arg2: i32) -> (i32, i32) {
    %c0_i32 = arith.constant 0 : i32
    %c0_i32_0 = arith.constant 0 : i32
    %c0_i32_1 = arith.constant 0 : i32
    return %c0_i32, %c0_i32_0 : i32, i32
  }
  func.func @transform_13(%arg0: i32, %arg1: i32, %arg2: i32) -> (i32, i32, i32, i32) {
    %c0_i32 = arith.constant 0 : i32
    %c0_i32_0 = arith.constant 0 : i32
    %c0_i32_1 = arith.constant 0 : i32
    return %arg0, %arg1, %c0_i32, %c0_i32_0 : i32, i32, i32, i32
  }
}

</mosaic_0001>

<llo_original>
// kernel: tpu_custom_call.1
$region0: #{tpu_custom_call.1}
  #allocation0 [shape = 'u32[]', space=smem, size = 0x4, offset = 0x4, fixed_abs, tag = 'smem constant byte address 0x4 - core index']
  #allocation1 [shape = 'u32[144,128]{1,0:T(1,128)}', space=vmem, size = 0x12000, scoped, tag = 'internal scratch']
  %s0 = inlined_call_operand.vmem [shape: f32[2,104,3], index: 0, kind: input, shape index: {}]
  %s1 = inlined_call_operand.vmem [shape: f32[3,64], index: 1, kind: input, shape index: {}]
  %s2 = inlined_call_operand.vmem [shape: bf16[64,128], index: 2, kind: input, shape index: {}]
  %s3 = inlined_call_operand.vmem [shape: bf16[128,256], index: 3, kind: input, shape index: {}]
  %s4 = inlined_call_operand.hbm [shape: bf16[256,512], index: 4, kind: input, shape index: {}]
  %s5 = inlined_call_operand.hbm [shape: bf16[512,256], index: 5, kind: input, shape index: {}]
  %s6 = inlined_call_operand.hbm [shape: bf16[256,128], index: 6, kind: input, shape index: {}]
  %s7 = inlined_call_operand.vmem [shape: f32[1,64], index: 7, kind: input, shape index: {}]
  %s8 = inlined_call_operand.vmem [shape: f32[1,128], index: 8, kind: input, shape index: {}]
  %s9 = inlined_call_operand.vmem [shape: f32[1,256], index: 9, kind: input, shape index: {}]
  %s10 = inlined_call_operand.vmem [shape: f32[1,512], index: 10, kind: input, shape index: {}]
  %s11 = inlined_call_operand.vmem [shape: f32[1,256], index: 11, kind: input, shape index: {}]
  %s12 = inlined_call_operand.vmem [shape: f32[1,128], index: 12, kind: input, shape index: {}]
  %s13 = inlined_call_operand.hbm [shape: f32[2,1,1,128], index: 13, kind: output, shape index: {}]
  %s14 = sld [smem:[#allocation0]]
  $region121: #{tpu_custom_call.1} parent=0
    _
  %s16 = ssub.s32 1, %s14
  %s17 = scalar_select 0, %s16, %s14
  $region1: #{tpu_custom_call.1} parent=0
    #allocation2 [shape = 'u8[262144]{0}', space=vmem, size = 0x40000, scoped, tag = 'input window, operand 4, single buffered']
    #allocation3 [shape = 's32[2]{0}', space=sflag, size = 0x8, scoped, tag = 'scoped memory for tpu_custom_call.1']
    #allocation4 [shape = 's32[2]{0}', space=sflag, size = 0x8, scoped, tag = 'scoped memory for tpu_custom_call.1']
    #allocation5 [shape = 'u8[262144]{0}', space=vmem, size = 0x40000, scoped, tag = 'input window, operand 5, single buffered']
    #allocation6 [shape = 's32[1]{0}', space=sflag, size = 0x4, scoped, tag = 'scoped memory for tpu_custom_call.1']
    #allocation7 [shape = 'u8[65536]{0}', space=vmem, size = 0x10000, scoped, tag = 'input window, operand 6, single buffered']
    #allocation8 [shape = 'u8[1024]{0}', space=vmem, size = 0x400, scoped, tag = 'output window, operand 0']
    %18 = vsyncpa [#allocation3], 0
    %19 = vsyncpa [#allocation6], 0
    %20 = vsyncpa [#allocation4], 0
    %s21 = scalar_lea.sflag [#allocation4], 1
    %22 = vsyncpa %s21, 0
    loop: start=0, step=1, limit=4
    $region2: #{tpu_custom_call.1} parent=1 // loop_pre_header
      _
    $region3: #{tpu_custom_call.1} parent=1 // loop_header
      %s24 = sphi 0, %s28
      %p25 = scmp.ge.s32.totalorder %s24, 4
      %s31 = sphi 0, %s50
      %s32 = sphi 0, %s46
      %s33 = sphi 0, %s42
      %s34 = sphi 0, %s31
      %s35 = sphi 0, %s32
      %s36 = sphi 0, %s33
      %s37 = sphi 0, %s34
      %s38 = sphi 0, %s35
      %s39 = sphi 0, %s36
      %s57 = sphi 0, %s59
      %s60 = sphi 0, %s57
      %s61 = sphi 0, %s60
      %s77 = sphi 0, %s61
      %s81 = sphi 0, %s81
      %s83 = sphi 0, %s81
      %s84 = sphi 0, %s83
      %s98 = sphi 0, %s84
      %s102 = sphi 0, %s102
      %s104 = sphi 0, %s102
      %s105 = sphi 0, %s104
      %s119 = sphi 0, %s105
      %s123 = sphi 0, %s123
      %s125 = sphi 0, %s123
      %s126 = sphi 0, %s125
      %s140 = sphi 0, %s126
      %s144 = sphi 0, %s144
      %s146 = sphi 0, %s144
      %s147 = sphi 0, %s146
      %s161 = sphi 0, %s147
      %s165 = sphi 0, %s165
      %s167 = sphi 0, %s165
      %s168 = sphi 0, %s167
      %s182 = sphi 0, %s168
      %s186 = sphi 0, %s186
      %s188 = sphi 0, %s186
      %s189 = sphi 0, %s188
      %s203 = sphi 0, %s189
      %s207 = sphi 0, %s207
      %s209 = sphi 0, %s207
      %s210 = sphi 0, %s209
      %s224 = sphi 0, %s210
      %s228 = sphi 0, %s228
      %s230 = sphi 0, %s228
      %s231 = sphi 0, %s230
      %s245 = sphi 0, %s231
      %s249 = sphi 0, %s249
      %s251 = sphi 0, %s249
      %s252 = sphi 0, %s251
      %s266 = sphi 0, %s252
      %s270 = sphi 0, %s270
      %s272 = sphi 0, %s270
      %s273 = sphi 0, %s272
      %s287 = sphi 0, %s273
      %s291 = sphi 0, %s291
      %s293 = sphi 0, %s291
      %s294 = sphi 0, %s293
      %s308 = sphi 0, %s294
      %s312 = sphi 0, %s312
      %s314 = sphi 0, %s312
      %s315 = sphi 0, %s314
      %s329 = sphi 0, %s315
      %s337 = sphi 0, %s339
      %s340 = sphi 0, %s337
      %s341 = sphi 0, %s340
      %s357 = sphi 0, %s341
    $region4: #{tpu_custom_call.1} parent=1 // loop_header_branch
      %27 = sbr.rel (%p25) target = $region8
    $region5: #{tpu_custom_call.1} parent=1 // loop_body
      %s29 = ssub.s32 %s24, 1
      %s30 = ssub.s32 %s24, 2
      %s40 = sadd.s32 1, %s33
      %p41 = scmp.ge.s32.totalorder %s40, 1
      %s42 = scalar_select %p41, 0, %s40
      %s43 = sadd.s32 1, %s32
      %s44 = scalar_select %p41, %s43, %s32
      %p45 = scmp.ge.s32.totalorder %s44, 1
      %s46 = scalar_select %p45, 0, %s44
      %s47 = sadd.s32 1, %s31
      %s48 = scalar_select %p45, %s47, %s31
      %p49 = scmp.ge.s32.totalorder %s48, 2
      %s50 = scalar_select %p49, 0, %s48
      %s51 = sadd.s32 %s32, %s33
      %s52 = sadd.s32 %s46, %s42
      %s53 = ssub.s32 %s31, %s50
      %s54 = ssub.s32 %s51, %s52
      %s55 = sor.u32 %s53, %s54
      %p56 = scmp.eq.s32.totalorder %s55, 0
      %s58 = sadd.s32 %s57, 1
      %s59 = scalar_select %p56, %s57, %s58
      %p62 = pneg %p56
      %p63 = scmp.eq.s32.totalorder %s24, 1
      %p64 = por %p62, %p63
      %p65 = scmp.ne.s32.totalorder %s57, %s60
      %p66 = scmp.eq.s32.totalorder %s24, 0
      %p67 = por %p65, %p66
      %p68 = scmp.ne.s32.totalorder %s57, %s60
      %p69 = scmp.eq.s32.totalorder %s29, 1
      %p70 = por %p68, %p69
      %p71 = scmp.ne.s32.totalorder %s60, %s61
      %p72 = scmp.eq.s32.totalorder %s29, 0
      %p73 = por %p71, %p72
      %p74 = scmp.ne.s32.totalorder %s60, %s61
      %p75 = scmp.eq.s32.totalorder %s30, 1
      %p76 = por %p74, %p75
      %p78 = scmp.ne.s32.totalorder %s61, %s77
      %p79 = scmp.eq.s32.totalorder %s30, 0
      %p80 = por %p78, %p79
      %s82 = sadd.s32 %s81, 1
      %p85 = scmp.eq.s32.totalorder %s24, 1
      %p86 = scmp.ne.s32.totalorder %s81, %s83
      %p87 = scmp.eq.s32.totalorder %s24, 0
      %p88 = por %p86, %p87
      %p89 = scmp.ne.s32.totalorder %s81, %s83
      %p90 = scmp.eq.s32.totalorder %s29, 1
      %p91 = por %p89, %p90
      %p92 = scmp.ne.s32.totalorder %s83, %s84
      %p93 = scmp.eq.s32.totalorder %s29, 0
      %p94 = por %p92, %p93
      %p95 = scmp.ne.s32.totalorder %s83, %s84
      %p96 = scmp.eq.s32.totalorder %s30, 1
      %p97 = por %p95, %p96
      %p99 = scmp.ne.s32.totalorder %s84, %s98
      %p100 = scmp.eq.s32.totalorder %s30, 0
      %p101 = por %p99, %p100
      %s103 = sadd.s32 %s102, 1
      %p106 = scmp.eq.s32.totalorder %s24, 1
      %p107 = scmp.ne.s32.totalorder %s102, %s104
      %p108 = scmp.eq.s32.totalorder %s24, 0
      %p109 = por %p107, %p108
      %p110 = scmp.ne.s32.totalorder %s102, %s104
      %p111 = scmp.eq.s32.totalorder %s29, 1
      %p112 = por %p110, %p111
      %p113 = scmp.ne.s32.totalorder %s104, %s105
      %p114 = scmp.eq.s32.totalorder %s29, 0
      %p115 = por %p113, %p114
      %p116 = scmp.ne.s32.totalorder %s104, %s105
      %p117 = scmp.eq.s32.totalorder %s30, 1
      %p118 = por %p116, %p117
      %p120 = scmp.ne.s32.totalorder %s105, %s119
      %p121 = scmp.eq.s32.totalorder %s30, 0
      %p122 = por %p120, %p121
      %s124 = sadd.s32 %s123, 1
      %p127 = scmp.eq.s32.totalorder %s24, 1
      %p128 = scmp.ne.s32.totalorder %s123, %s125
      %p129 = scmp.eq.s32.totalorder %s24, 0
      %p130 = por %p128, %p129
      %p131 = scmp.ne.s32.totalorder %s123, %s125
      %p132 = scmp.eq.s32.totalorder %s29, 1
      %p133 = por %p131, %p132
      %p134 = scmp.ne.s32.totalorder %s125, %s126
      %p135 = scmp.eq.s32.totalorder %s29, 0
      %p136 = por %p134, %p135
      %p137 = scmp.ne.s32.totalorder %s125, %s126
      %p138 = scmp.eq.s32.totalorder %s30, 1
      %p139 = por %p137, %p138
      %p141 = scmp.ne.s32.totalorder %s126, %s140
      %p142 = scmp.eq.s32.totalorder %s30, 0
      %p143 = por %p141, %p142
      %s145 = sadd.s32 %s144, 1
      %p148 = scmp.eq.s32.totalorder %s24, 1
      %p149 = scmp.ne.s32.totalorder %s144, %s146
      %p150 = scmp.eq.s32.totalorder %s24, 0
      %p151 = por %p149, %p150
      %p152 = scmp.ne.s32.totalorder %s144, %s146
      %p153 = scmp.eq.s32.totalorder %s29, 1
      %p154 = por %p152, %p153
      %p155 = scmp.ne.s32.totalorder %s146, %s147
      %p156 = scmp.eq.s32.totalorder %s29, 0
      %p157 = por %p155, %p156
      %p158 = scmp.ne.s32.totalorder %s146, %s147
      %p159 = scmp.eq.s32.totalorder %s30, 1
      %p160 = por %p158, %p159
      %p162 = scmp.ne.s32.totalorder %s147, %s161
      %p163 = scmp.eq.s32.totalorder %s30, 0
      %p164 = por %p162, %p163
      %s166 = sadd.s32 %s165, 1
      %p169 = scmp.eq.s32.totalorder %s24, 1
      %p170 = scmp.ne.s32.totalorder %s165, %s167
      %p171 = scmp.eq.s32.totalorder %s24, 0
      %p172 = por %p170, %p171
      %p173 = scmp.ne.s32.totalorder %s165, %s167
      %p174 = scmp.eq.s32.totalorder %s29, 1
      %p175 = por %p173, %p174
      %p176 = scmp.ne.s32.totalorder %s167, %s168
      %p177 = scmp.eq.s32.totalorder %s29, 0
      %p178 = por %p176, %p177
      %p179 = scmp.ne.s32.totalorder %s167, %s168
      %p180 = scmp.eq.s32.totalorder %s30, 1
      %p181 = por %p179, %p180
      %p183 = scmp.ne.s32.totalorder %s168, %s182
      %p184 = scmp.eq.s32.totalorder %s30, 0
      %p185 = por %p183, %p184
      %s187 = sadd.s32 %s186, 1
      %p190 = scmp.eq.s32.totalorder %s24, 1
      %p191 = scmp.ne.s32.totalorder %s186, %s188
      %p192 = scmp.eq.s32.totalorder %s24, 0
      %p193 = por %p191, %p192
      %p194 = scmp.ne.s32.totalorder %s186, %s188
      %p195 = scmp.eq.s32.totalorder %s29, 1
      %p196 = por %p194, %p195
      %p197 = scmp.ne.s32.totalorder %s188, %s189
      %p198 = scmp.eq.s32.totalorder %s29, 0
      %p199 = por %p197, %p198
      %p200 = scmp.ne.s32.totalorder %s188, %s189
      %p201 = scmp.eq.s32.totalorder %s30, 1
      %p202 = por %p200, %p201
      %p204 = scmp.ne.s32.totalorder %s189, %s203
      %p205 = scmp.eq.s32.totalorder %s30, 0
      %p206 = por %p204, %p205
      %s208 = sadd.s32 %s207, 1
      %p211 = scmp.eq.s32.totalorder %s24, 1
      %p212 = scmp.ne.s32.totalorder %s207, %s209
      %p213 = scmp.eq.s32.totalorder %s24, 0
      %p214 = por %p212, %p213
      %p215 = scmp.ne.s32.totalorder %s207, %s209
      %p216 = scmp.eq.s32.totalorder %s29, 1
      %p217 = por %p215, %p216
      %p218 = scmp.ne.s32.totalorder %s209, %s210
      %p219 = scmp.eq.s32.totalorder %s29, 0
      %p220 = por %p218, %p219
      %p221 = scmp.ne.s32.totalorder %s209, %s210
      %p222 = scmp.eq.s32.totalorder %s30, 1
      %p223 = por %p221, %p222
      %p225 = scmp.ne.s32.totalorder %s210, %s224
      %p226 = scmp.eq.s32.totalorder %s30, 0
      %p227 = por %p225, %p226
      %s229 = sadd.s32 %s228, 1
      %p232 = scmp.eq.s32.totalorder %s24, 1
      %p233 = scmp.ne.s32.totalorder %s228, %s230
      %p234 = scmp.eq.s32.totalorder %s24, 0
      %p235 = por %p233, %p234
      %p236 = scmp.ne.s32.totalorder %s228, %s230
      %p237 = scmp.eq.s32.totalorder %s29, 1
      %p238 = por %p236, %p237
      %p239 = scmp.ne.s32.totalorder %s230, %s231
      %p240 = scmp.eq.s32.totalorder %s29, 0
      %p241 = por %p239, %p240
      %p242 = scmp.ne.s32.totalorder %s230, %s231
      %p243 = scmp.eq.s32.totalorder %s30, 1
      %p244 = por %p242, %p243
      %p246 = scmp.ne.s32.totalorder %s231, %s245
      %p247 = scmp.eq.s32.totalorder %s30, 0
      %p248 = por %p246, %p247
      %s250 = sadd.s32 %s249, 1
      %p253 = scmp.eq.s32.totalorder %s24, 1
      %p254 = scmp.ne.s32.totalorder %s249, %s251
      %p255 = scmp.eq.s32.totalorder %s24, 0
      %p256 = por %p254, %p255
      %p257 = scmp.ne.s32.totalorder %s249, %s251
      %p258 = scmp.eq.s32.totalorder %s29, 1
      %p259 = por %p257, %p258
      %p260 = scmp.ne.s32.totalorder %s251, %s252
      %p261 = scmp.eq.s32.totalorder %s29, 0
      %p262 = por %p260, %p261
      %p263 = scmp.ne.s32.totalorder %s251, %s252
      %p264 = scmp.eq.s32.totalorder %s30, 1
      %p265 = por %p263, %p264
      %p267 = scmp.ne.s32.totalorder %s252, %s266
      %p268 = scmp.eq.s32.totalorder %s30, 0
      %p269 = por %p267, %p268
      %s271 = sadd.s32 %s270, 1
      %p274 = scmp.eq.s32.totalorder %s24, 1
      %p275 = scmp.ne.s32.totalorder %s270, %s272
      %p276 = scmp.eq.s32.totalorder %s24, 0
      %p277 = por %p275, %p276
      %p278 = scmp.ne.s32.totalorder %s270, %s272
      %p279 = scmp.eq.s32.totalorder %s29, 1
      %p280 = por %p278, %p279
      %p281 = scmp.ne.s32.totalorder %s272, %s273
      %p282 = scmp.eq.s32.totalorder %s29, 0
      %p283 = por %p281, %p282
      %p284 = scmp.ne.s32.totalorder %s272, %s273
      %p285 = scmp.eq.s32.totalorder %s30, 1
      %p286 = por %p284, %p285
      %p288 = scmp.ne.s32.totalorder %s273, %s287
      %p289 = scmp.eq.s32.totalorder %s30, 0
      %p290 = por %p288, %p289
      %s292 = sadd.s32 %s291, 1
      %p295 = scmp.eq.s32.totalorder %s24, 1
      %p296 = scmp.ne.s32.totalorder %s291, %s293
      %p297 = scmp.eq.s32.totalorder %s24, 0
      %p298 = por %p296, %p297
      %p299 = scmp.ne.s32.totalorder %s291, %s293
      %p300 = scmp.eq.s32.totalorder %s29, 1
      %p301 = por %p299, %p300
      %p302 = scmp.ne.s32.totalorder %s293, %s294
      %p303 = scmp.eq.s32.totalorder %s29, 0
      %p304 = por %p302, %p303
      %p305 = scmp.ne.s32.totalorder %s293, %s294
      %p306 = scmp.eq.s32.totalorder %s30, 1
      %p307 = por %p305, %p306
      %p309 = scmp.ne.s32.totalorder %s294, %s308
      %p310 = scmp.eq.s32.totalorder %s30, 0
      %p311 = por %p309, %p310
      %s313 = sadd.s32 %s312, 1
      %p316 = scmp.eq.s32.totalorder %s24, 1
      %p317 = scmp.ne.s32.totalorder %s312, %s314
      %p318 = scmp.eq.s32.totalorder %s24, 0
      %p319 = por %p317, %p318
      %p320 = scmp.ne.s32.totalorder %s312, %s314
      %p321 = scmp.eq.s32.totalorder %s29, 1
      %p322 = por %p320, %p321
      %p323 = scmp.ne.s32.totalorder %s314, %s315
      %p324 = scmp.eq.s32.totalorder %s29, 0
      %p325 = por %p323, %p324
      %p326 = scmp.ne.s32.totalorder %s314, %s315
      %p327 = scmp.eq.s32.totalorder %s30, 1
      %p328 = por %p326, %p327
      %p330 = scmp.ne.s32.totalorder %s315, %s329
      %p331 = scmp.eq.s32.totalorder %s30, 0
      %p332 = por %p330, %p331
      %s333 = ssub.s32 %s31, %s50
      %s334 = ssub.s32 %s32, %s46
      %s335 = sor.u32 %s333, %s334
      %p336 = scmp.eq.s32.totalorder %s335, 0
      %s338 = sadd.s32 %s337, 1
      %s339 = scalar_select %p336, %s337, %s338
      %p342 = pneg %p336
      %p343 = scmp.eq.s32.totalorder %s24, 1
      %p344 = por %p342, %p343
      %p345 = scmp.ne.s32.totalorder %s337, %s340
      %p346 = scmp.eq.s32.totalorder %s24, 0
      %p347 = por %p345, %p346
      %p348 = scmp.ne.s32.totalorder %s337, %s340
      %p349 = scmp.eq.s32.totalorder %s29, 1
      %p350 = por %p348, %p349
      %p351 = scmp.ne.s32.totalorder %s340, %s341
      %p352 = scmp.eq.s32.totalorder %s29, 0
      %p353 = por %p351, %p352
      %p354 = scmp.ne.s32.totalorder %s340, %s341
      %p355 = scmp.eq.s32.totalorder %s30, 1
      %p356 = por %p354, %p355
      %p358 = scmp.ne.s32.totalorder %s341, %s357
      %p359 = scmp.eq.s32.totalorder %s30, 0
      %p360 = por %p358, %p359
      %p361 = scmp.le.s32.totalorder 1, %s24
      %p362 = scmp.lt.s32.totalorder %s24, 3
      %p363 = pnand %p361, %p362
      %p364 = pneg %p363
      // Predicated region
      $region9: #{tpu_custom_call.1} parent=5 // pred_check
        _
      $region10: #{tpu_custom_call.1} parent=5 // pred_check_branch
        %366 = sbr.rel (%p363) target = $region12
      $region11: #{tpu_custom_call.1} parent=5 // pred_region
        %s367 = ssub.s32 %s24, 1
        // Predicated region
        $region13: #{tpu_custom_call.1} parent=11 // pred_check
          %p368 = pneg %p94
        $region14: #{tpu_custom_call.1} parent=11 // pred_check_branch
          %370 = sbr.rel (%p368) target = $region16
        $region15: #{tpu_custom_call.1} parent=11 // pred_region
          _
        $region16: #{tpu_custom_call.1} parent=11 // pred_fallthru
          _
        // Predicated region
        $region17: #{tpu_custom_call.1} parent=11 // pred_check
          %p371 = pneg %p115
        $region18: #{tpu_custom_call.1} parent=11 // pred_check_branch
          %373 = sbr.rel (%p371) target = $region20
        $region19: #{tpu_custom_call.1} parent=11 // pred_region
          _
        $region20: #{tpu_custom_call.1} parent=11 // pred_fallthru
          _
        // Predicated region
        $region21: #{tpu_custom_call.1} parent=11 // pred_check
          %p374 = pneg %p136
        $region22: #{tpu_custom_call.1} parent=11 // pred_check_branch
          %376 = sbr.rel (%p374) target = $region24
        $region23: #{tpu_custom_call.1} parent=11 // pred_region
          _
        $region24: #{tpu_custom_call.1} parent=11 // pred_fallthru
          _
        // Predicated region
        $region25: #{tpu_custom_call.1} parent=11 // pred_check
          %p377 = pneg %p157
        $region26: #{tpu_custom_call.1} parent=11 // pred_check_branch
          %379 = sbr.rel (%p377) target = $region28
        $region27: #{tpu_custom_call.1} parent=11 // pred_region
          %s381 = ssub.s32 8192, 8192
          %382 = vsyncadd [#allocation3], %s381
          %s383 = sshll.u32 [#allocation2], 4
          %s384 = int_to_ptr.vmem [resolvable:$true] %s383
          %389 = dma.hbm_to_vmem [thread:$0]  %s4, 8192, %s384, [#allocation3], 256, 256, 16
        $region28: #{tpu_custom_call.1} parent=11 // pred_fallthru
          _
        // Predicated region
        $region29: #{tpu_custom_call.1} parent=11 // pred_check
          %p390 = pneg %p178
        $region30: #{tpu_custom_call.1} parent=11 // pred_check_branch
          %392 = sbr.rel (%p390) target = $region32
        $region31: #{tpu_custom_call.1} parent=11 // pred_region
          %s394 = ssub.s32 8192, 8192
          %395 = vsyncadd [#allocation6], %s394
          %s396 = sshll.u32 [#allocation5], 4
          %s397 = int_to_ptr.vmem [resolvable:$true] %s396
          %402 = dma.hbm_to_vmem [thread:$0]  %s5, 8192, %s397, [#allocation6], 128, 128, 8
        $region32: #{tpu_custom_call.1} parent=11 // pred_fallthru
          _
        // Predicated region
        $region33: #{tpu_custom_call.1} parent=11 // pred_check
          %p403 = pneg %p199
        $region34: #{tpu_custom_call.1} parent=11 // pred_check_branch
          %405 = sbr.rel (%p403) target = $region36
        $region35: #{tpu_custom_call.1} parent=11 // pred_region
          %s407 = ssub.s32 2048, 2048
          %408 = vsyncadd [#allocation6], %s407
          %s409 = sshll.u32 [#allocation7], 4
          %s410 = int_to_ptr.vmem [resolvable:$true] %s409
          %415 = dma.hbm_to_vmem [thread:$0]  %s6, 2048, %s410, [#allocation6], 64, 64, 4
        $region36: #{tpu_custom_call.1} parent=11 // pred_fallthru
          _
        // Predicated region
        $region37: #{tpu_custom_call.1} parent=11 // pred_check
          %p416 = pneg %p220
        $region38: #{tpu_custom_call.1} parent=11 // pred_check_branch
          %418 = sbr.rel (%p416) target = $region40
        $region39: #{tpu_custom_call.1} parent=11 // pred_region
          _
        $region40: #{tpu_custom_call.1} parent=11 // pred_fallthru
          _
        // Predicated region
        $region41: #{tpu_custom_call.1} parent=11 // pred_check
          %p419 = pneg %p241
        $region42: #{tpu_custom_call.1} parent=11 // pred_check_branch
          %421 = sbr.rel (%p419) target = $region44
        $region43: #{tpu_custom_call.1} parent=11 // pred_region
          _
        $region44: #{tpu_custom_call.1} parent=11 // pred_fallthru
          _
        // Predicated region
        $region45: #{tpu_custom_call.1} parent=11 // pred_check
          %p422 = pneg %p262
        $region46: #{tpu_custom_call.1} parent=11 // pred_check_branch
          %424 = sbr.rel (%p422) target = $region48
        $region47: #{tpu_custom_call.1} parent=11 // pred_region
          _
        $region48: #{tpu_custom_call.1} parent=11 // pred_fallthru
          _
        // Predicated region
        $region49: #{tpu_custom_call.1} parent=11 // pred_check
          %p425 = pneg %p283
        $region50: #{tpu_custom_call.1} parent=11 // pred_check_branch
          %427 = sbr.rel (%p425) target = $region52
        $region51: #{tpu_custom_call.1} parent=11 // pred_region
          _
        $region52: #{tpu_custom_call.1} parent=11 // pred_fallthru
          _
        // Predicated region
        $region53: #{tpu_custom_call.1} parent=11 // pred_check
          %p428 = pneg %p304
        $region54: #{tpu_custom_call.1} parent=11 // pred_check_branch
          %430 = sbr.rel (%p428) target = $region56
        $region55: #{tpu_custom_call.1} parent=11 // pred_region
          _
        $region56: #{tpu_custom_call.1} parent=11 // pred_fallthru
          _
        // Predicated region
        $region57: #{tpu_custom_call.1} parent=11 // pred_check
          %p431 = pneg %p325
        $region58: #{tpu_custom_call.1} parent=11 // pred_check_branch
          %433 = sbr.rel (%p431) target = $region60
        $region59: #{tpu_custom_call.1} parent=11 // pred_region
          _
        $region60: #{tpu_custom_call.1} parent=11 // pred_fallthru
          _
      $region12: #{tpu_custom_call.1} parent=5 // pred_fallthru
        _
      %p434 = scmp.lt.s32.totalorder %s24, 2
      // Predicated region
      $region61: #{tpu_custom_call.1} parent=5 // pred_check
        %p435 = pneg %p434
      $region62: #{tpu_custom_call.1} parent=5 // pred_check_branch
        %437 = sbr.rel (%p435) target = $region64
      $region63: #{tpu_custom_call.1} parent=5 // pred_region
        // Predicated region
        $region65: #{tpu_custom_call.1} parent=63 // pred_check
          %p438 = pneg %p67
        $region66: #{tpu_custom_call.1} parent=63 // pred_check_branch
          %440 = sbr.rel (%p438) target = $region68
        $region67: #{tpu_custom_call.1} parent=63 // pred_region
          %s441 = sadd.s32 %s32, %s33
          %s442 = smul.u32 13, %s441
          %p443 = scmp.lt.s32.totalorder %s31, 1
          %s444 = scalar_select %p443, %s31, 1
          %p445 = scmp.lt.s32.totalorder %s442, 12
          %s446 = scalar_select %p445, %s442, 12
          %s447 = smul.addr %s444, 13
          %s448 = sadd.s32 %s446, %s447
          %s449 = smul.addr %s448, 8
          %s450 = scalar_lea.vmem %s0, %s449
          %s451 = sadd.s32 %s32, %s33
          %s452 = smul.u32 13, %s451
        $region68: #{tpu_custom_call.1} parent=63 // pred_fallthru
          _
      $region64: #{tpu_custom_call.1} parent=5 // pred_fallthru
        _
      %p453 = scmp.le.s32.totalorder 1, %s24
      %p454 = scmp.lt.s32.totalorder %s24, 3
      %p455 = pnand %p453, %p454
      %p456 = pneg %p455
      // Predicated region
      $region69: #{tpu_custom_call.1} parent=5 // pred_check
        _
      $region70: #{tpu_custom_call.1} parent=5 // pred_check_branch
        %458 = sbr.rel (%p455) target = $region72
      $region71: #{tpu_custom_call.1} parent=5 // pred_region
        %s459 = ssub.s32 %s24, 1
        // Predicated region
        $region73: #{tpu_custom_call.1} parent=71 // pred_check
          %p460 = pneg %p157
        $region74: #{tpu_custom_call.1} parent=71 // pred_check_branch
          %462 = sbr.rel (%p460) target = $region76
        $region75: #{tpu_custom_call.1} parent=71 // pred_region
          %463 = dma.done [#allocation3], 8192
        $region76: #{tpu_custom_call.1} parent=71 // pred_fallthru
          _
        // Predicated region
        $region77: #{tpu_custom_call.1} parent=71 // pred_check
          %p464 = pneg %p178
        $region78: #{tpu_custom_call.1} parent=71 // pred_check_branch
          %466 = sbr.rel (%p464) target = $region80
        $region79: #{tpu_custom_call.1} parent=71 // pred_region
          %467 = dma.done [#allocation6], 8192
        $region80: #{tpu_custom_call.1} parent=71 // pred_fallthru
          _
        // Predicated region
        $region81: #{tpu_custom_call.1} parent=71 // pred_check
          %p468 = pneg %p199
        $region82: #{tpu_custom_call.1} parent=71 // pred_check_branch
          %470 = sbr.rel (%p468) target = $region84
        $region83: #{tpu_custom_call.1} parent=71 // pred_region
          %471 = dma.done [#allocation6], 2048
        $region84: #{tpu_custom_call.1} parent=71 // pred_fallthru
          _
        %s472 = sadd.s32 %s35, %s36
        %s473 = smul.u32 13, %s472
        %p474 = scmp.lt.s32.totalorder %s34, 1
        %s475 = scalar_select %p474, %s34, 1
        %p476 = scmp.lt.s32.totalorder %s473, 12
        %s477 = scalar_select %p476, %s473, 12
        %s478 = smul.addr %s475, 13
        %s479 = sadd.s32 %s477, %s478
        %s480 = smul.addr %s479, 8
        %s481 = scalar_lea.vmem %s0, %s480
        %p482 = pneg %p73
        %p483 = pneg %p70
        %p484 = pneg %p94
        %p485 = pneg %p91
        %p486 = pneg %p115
        %p487 = pneg %p112
        %p488 = pneg %p136
        %p489 = pneg %p133
        %p490 = pneg %p157
        %p491 = pneg %p154
        %p492 = pneg %p178
        %p493 = pneg %p175
        %p494 = pneg %p199
        %p495 = pneg %p196
        %p496 = pneg %p220
        %p497 = pneg %p217
        %p498 = pneg %p241
        %p499 = pneg %p238
        %p500 = pneg %p262
        %p501 = pneg %p259
        %p502 = pneg %p283
        %p503 = pneg %p280
        %p504 = pneg %p304
        %p505 = pneg %p301
        %p506 = pneg %p325
        %p507 = pneg %p322
        %p508 = pneg %p353
        %p509 = pneg %p350
        %s510 = sand.u32 %s340, 1
        %s511 = scalar_lea.sflag [#allocation4], %s510
        %s512 = sand.u32 %s340, 1
        %s513 = scalar_lea.vmem [#allocation8], %s512
        %s514 = sadd.s32 %s35, %s36
        %s515 = smul.u32 13, %s514
        %p516 = scmp.lt.s32.totalorder %s34, 1
        %s517 = scalar_select %p516, %s34, 1
        %p518 = scmp.lt.s32.totalorder %s515, 12
        %s519 = scalar_select %p518, %s515, 12
        %s520 = smul.addr %s517, 13
        %s521 = sadd.s32 %s519, %s520
        %s522 = smul.addr %s521, 8
        %s523 = scalar_lea.vmem %s0, %s522
        %s524 = sadd.s32 %s35, %s36
        %s525 = smul.u32 13, %s524
        %v527 = vld [vmem:[%s523] sm:$0xff]
        %v528 = vld [vmem:[%s523 + $0x8] sm:$0xff]
        %v529 = vld [vmem:[%s523 + $0x10] sm:$0xff]
        %v530 = vld [vmem:[%s523 + $0x18] sm:$0xff]
        %v531 = vld [vmem:[%s523 + $0x20] sm:$0xff]
        %v532 = vld [vmem:[%s523 + $0x28] sm:$0xff]
        %v533 = vld [vmem:[%s523 + $0x30] sm:$0xff]
        %v534 = vld [vmem:[%s523 + $0x38] sm:$0xff]
        %v535 = vld [vmem:[%s523 + $0x40] sm:$0xff]
        %v536 = vld [vmem:[%s523 + $0x48] sm:$0xff]
        %v537 = vld [vmem:[%s523 + $0x50] sm:$0xff]
        %v538 = vld [vmem:[%s523 + $0x58] sm:$0xff]
        %v539 = vld [vmem:[%s523 + $0x60] sm:$0xff]
        %v540 = vld [vmem:[%s1] sm:$0x1]
        %542 = vset.pattern.permute.xlu0 0
        %543 = vperm.xlu0 %542, %v527
        %v544 = vpop.permute.xlu0 %543
        %547 = vset.pattern.permute.xlu0 0
        %548 = vperm.xlu0 %547, %v528
        %v549 = vpop.permute.xlu0 %548
        %552 = vset.pattern.permute.xlu0 0
        %553 = vperm.xlu0 %552, %v529
        %v554 = vpop.permute.xlu0 %553
        %557 = vset.pattern.permute.xlu0 0
        %558 = vperm.xlu0 %557, %v530
        %v559 = vpop.permute.xlu0 %558
        %562 = vset.pattern.permute.xlu0 0
        %563 = vperm.xlu0 %562, %v531
        %v564 = vpop.permute.xlu0 %563
        %567 = vset.pattern.permute.xlu0 0
        %568 = vperm.xlu0 %567, %v532
        %v569 = vpop.permute.xlu0 %568
        %572 = vset.pattern.permute.xlu0 0
        %573 = vperm.xlu0 %572, %v533
        %v574 = vpop.permute.xlu0 %573
        %577 = vset.pattern.permute.xlu0 0
        %578 = vperm.xlu0 %577, %v534
        %v579 = vpop.permute.xlu0 %578
        %582 = vset.pattern.permute.xlu0 0
        %583 = vperm.xlu0 %582, %v535
        %v584 = vpop.permute.xlu0 %583
        %587 = vset.pattern.permute.xlu0 0
        %588 = vperm.xlu0 %587, %v536
        %v589 = vpop.permute.xlu0 %588
        %592 = vset.pattern.permute.xlu0 0
        %593 = vperm.xlu0 %592, %v537
        %v594 = vpop.permute.xlu0 %593
        %597 = vset.pattern.permute.xlu0 0
        %598 = vperm.xlu0 %597, %v538
        %v599 = vpop.permute.xlu0 %598
        %602 = vset.pattern.permute.xlu0 0
        %603 = vperm.xlu0 %602, %v539
        %v604 = vpop.permute.xlu0 %603
        %v606 = vlaneseq
        %v607 = vshrl.u32 %v606, 7
        %v608 = vsub.s32 0, %v607
        %v609 = vrot.slane %v540, %v608
        %v610 = vmul.f32 %v544, %v609
        %v611 = vmul.f32 %v549, %v609
        %v612 = vmul.f32 %v554, %v609
        %v613 = vmul.f32 %v559, %v609
        %v614 = vmul.f32 %v564, %v609
        %v615 = vmul.f32 %v569, %v609
        %v616 = vmul.f32 %v574, %v609
        %v617 = vmul.f32 %v579, %v609
        %v618 = vmul.f32 %v584, %v609
        %v619 = vmul.f32 %v589, %v609
        %v620 = vmul.f32 %v594, %v609
        %v621 = vmul.f32 %v599, %v609
        %v622 = vmul.f32 %v604, %v609
        %v623 = vld [vmem:[%s1 + $0x1] sm:$0x1]
        %624 = vset.pattern.permute.xlu0 1
        %625 = vperm.xlu0 %624, %v527
        %v626 = vpop.permute.xlu0 %625
        %628 = vset.pattern.permute.xlu0 1
        %629 = vperm.xlu0 %628, %v528
        %v630 = vpop.permute.xlu0 %629
        %632 = vset.pattern.permute.xlu0 1
        %633 = vperm.xlu0 %632, %v529
        %v634 = vpop.permute.xlu0 %633
        %636 = vset.pattern.permute.xlu0 1
        %637 = vperm.xlu0 %636, %v530
        %v638 = vpop.permute.xlu0 %637
        %640 = vset.pattern.permute.xlu0 1
        %641 = vperm.xlu0 %640, %v531
        %v642 = vpop.permute.xlu0 %641
        %644 = vset.pattern.permute.xlu0 1
        %645 = vperm.xlu0 %644, %v532
        %v646 = vpop.permute.xlu0 %645
        %648 = vset.pattern.permute.xlu0 1
        %649 = vperm.xlu0 %648, %v533
        %v650 = vpop.permute.xlu0 %649
        %652 = vset.pattern.permute.xlu0 1
        %653 = vperm.xlu0 %652, %v534
        %v654 = vpop.permute.xlu0 %653
        %656 = vset.pattern.permute.xlu0 1
        %657 = vperm.xlu0 %656, %v535
        %v658 = vpop.permute.xlu0 %657
        %660 = vset.pattern.permute.xlu0 1
        %661 = vperm.xlu0 %660, %v536
        %v662 = vpop.permute.xlu0 %661
        %664 = vset.pattern.permute.xlu0 1
        %665 = vperm.xlu0 %664, %v537
        %v666 = vpop.permute.xlu0 %665
        %668 = vset.pattern.permute.xlu0 1
        %669 = vperm.xlu0 %668, %v538
        %v670 = vpop.permute.xlu0 %669
        %672 = vset.pattern.permute.xlu0 1
        %673 = vperm.xlu0 %672, %v539
        %v674 = vpop.permute.xlu0 %673
        %v676 = vlaneseq
        %v677 = vshrl.u32 %v676, 7
        %v678 = vsub.s32 0, %v677
        %v679 = vrot.slane %v623, %v678
        %v680 = vmul.f32 %v626, %v679
        %v681 = vmul.f32 %v630, %v679
        %v682 = vmul.f32 %v634, %v679
        %v683 = vmul.f32 %v638, %v679
        %v684 = vmul.f32 %v642, %v679
        %v685 = vmul.f32 %v646, %v679
        %v686 = vmul.f32 %v650, %v679
        %v687 = vmul.f32 %v654, %v679
        %v688 = vmul.f32 %v658, %v679
        %v689 = vmul.f32 %v662, %v679
        %v690 = vmul.f32 %v666, %v679
        %v691 = vmul.f32 %v670, %v679
        %v692 = vmul.f32 %v674, %v679
        %v693 = vadd.f32 %v610, %v680
        %v694 = vadd.f32 %v611, %v681
        %v695 = vadd.f32 %v612, %v682
        %v696 = vadd.f32 %v613, %v683
        %v697 = vadd.f32 %v614, %v684
        %v698 = vadd.f32 %v615, %v685
        %v699 = vadd.f32 %v616, %v686
        %v700 = vadd.f32 %v617, %v687
        %v701 = vadd.f32 %v618, %v688
        %v702 = vadd.f32 %v619, %v689
        %v703 = vadd.f32 %v620, %v690
        %v704 = vadd.f32 %v621, %v691
        %v705 = vadd.f32 %v622, %v692
        %v706 = vld [vmem:[%s1 + $0x2] sm:$0x1]
        %707 = vset.pattern.permute.xlu0 2
        %708 = vperm.xlu0 %707, %v527
        %v709 = vpop.permute.xlu0 %708
        %711 = vset.pattern.permute.xlu0 2
        %712 = vperm.xlu0 %711, %v528
        %v713 = vpop.permute.xlu0 %712
        %715 = vset.pattern.permute.xlu0 2
        %716 = vperm.xlu0 %715, %v529
        %v717 = vpop.permute.xlu0 %716
        %719 = vset.pattern.permute.xlu0 2
        %720 = vperm.xlu0 %719, %v530
        %v721 = vpop.permute.xlu0 %720
        %723 = vset.pattern.permute.xlu0 2
        %724 = vperm.xlu0 %723, %v531
        %v725 = vpop.permute.xlu0 %724
        %727 = vset.pattern.permute.xlu0 2
        %728 = vperm.xlu0 %727, %v532
        %v729 = vpop.permute.xlu0 %728
        %731 = vset.pattern.permute.xlu0 2
        %732 = vperm.xlu0 %731, %v533
        %v733 = vpop.permute.xlu0 %732
        %735 = vset.pattern.permute.xlu0 2
        %736 = vperm.xlu0 %735, %v534
        %v737 = vpop.permute.xlu0 %736
        %739 = vset.pattern.permute.xlu0 2
        %740 = vperm.xlu0 %739, %v535
        %v741 = vpop.permute.xlu0 %740
        %743 = vset.pattern.permute.xlu0 2
        %744 = vperm.xlu0 %743, %v536
        %v745 = vpop.permute.xlu0 %744
        %747 = vset.pattern.permute.xlu0 2
        %748 = vperm.xlu0 %747, %v537
        %v749 = vpop.permute.xlu0 %748
        %751 = vset.pattern.permute.xlu0 2
        %752 = vperm.xlu0 %751, %v538
        %v753 = vpop.permute.xlu0 %752
        %755 = vset.pattern.permute.xlu0 2
        %756 = vperm.xlu0 %755, %v539
        %v757 = vpop.permute.xlu0 %756
        %v759 = vlaneseq
        %v760 = vshrl.u32 %v759, 7
        %v761 = vsub.s32 0, %v760
        %v762 = vrot.slane %v706, %v761
        %v763 = vmul.f32 %v709, %v762
        %v764 = vmul.f32 %v713, %v762
        %v765 = vmul.f32 %v717, %v762
        %v766 = vmul.f32 %v721, %v762
        %v767 = vmul.f32 %v725, %v762
        %v768 = vmul.f32 %v729, %v762
        %v769 = vmul.f32 %v733, %v762
        %v770 = vmul.f32 %v737, %v762
        %v771 = vmul.f32 %v741, %v762
        %v772 = vmul.f32 %v745, %v762
        %v773 = vmul.f32 %v749, %v762
        %v774 = vmul.f32 %v753, %v762
        %v775 = vmul.f32 %v757, %v762
        %v776 = vadd.f32 %v693, %v763
        %v777 = vadd.f32 %v694, %v764
        %v778 = vadd.f32 %v695, %v765
        %v779 = vadd.f32 %v696, %v766
        %v780 = vadd.f32 %v697, %v767
        %v781 = vadd.f32 %v698, %v768
        %v782 = vadd.f32 %v699, %v769
        %v783 = vadd.f32 %v700, %v770
        %v784 = vadd.f32 %v701, %v771
        %v785 = vadd.f32 %v702, %v772
        %v786 = vadd.f32 %v703, %v773
        %v787 = vadd.f32 %v704, %v774
        %v788 = vadd.f32 %v705, %v775
        %v789 = vld [vmem:[%s7] sm:$0x1]
        %v791 = vlaneseq
        %v792 = vshrl.u32 %v791, 7
        %v793 = vsub.s32 0, %v792
        %v794 = vrot.slane %v789, %v793
        %v796 = vadd.f32 %v776, %v794
        %v797 = vadd.f32 %v777, %v794
        %v798 = vadd.f32 %v778, %v794
        %v799 = vadd.f32 %v779, %v794
        %v800 = vadd.f32 %v780, %v794
        %v801 = vadd.f32 %v781, %v794
        %v802 = vadd.f32 %v782, %v794
        %v803 = vadd.f32 %v783, %v794
        %v804 = vadd.f32 %v784, %v794
        %v805 = vadd.f32 %v785, %v794
        %v806 = vadd.f32 %v786, %v794
        %v807 = vadd.f32 %v787, %v794
        %v808 = vadd.f32 %v788, %v794
        %v809 = vmax.f32 %v796, 0.0
        %v810 = vmax.f32 %v797, 0.0
        %v811 = vmax.f32 %v798, 0.0
        %v812 = vmax.f32 %v799, 0.0
        %v813 = vmax.f32 %v800, 0.0
        %v814 = vmax.f32 %v801, 0.0
        %v815 = vmax.f32 %v802, 0.0
        %v816 = vmax.f32 %v803, 0.0
        %v817 = vmax.f32 %v804, 0.0
        %v818 = vmax.f32 %v805, 0.0
        %v819 = vmax.f32 %v806, 0.0
        %v820 = vmax.f32 %v807, 0.0
        %v821 = vmax.f32 %v808, 0.0
        %v822 = vpack.c.bf16 %v810, %v809
        %v823 = vpack.c.bf16 %v812, %v811
        %v824 = vpack.c.bf16 %v814, %v813
        %v825 = vpack.c.bf16 %v816, %v815
        %v826 = vpack.c.bf16 %v818, %v817
        %v827 = vpack.c.bf16 %v820, %v819
        %v828 = vpack.c.bf16 %v821, %v821
        %v829 = vld [vmem:[%s2] sm:$0xf]
        %v830 = vld [vmem:[%s2 + $0x4] sm:$0xf]
        %v831 = vld [vmem:[%s2 + $0x8] sm:$0xf]
        %v832 = vld [vmem:[%s2 + $0xc] sm:$0xf]
        %v833 = vld [vmem:[%s2 + $0x10] sm:$0xf]
        %v834 = vld [vmem:[%s2 + $0x14] sm:$0xf]
        %v835 = vld [vmem:[%s2 + $0x18] sm:$0xf]
        %v836 = vld [vmem:[%s2 + $0x1c] sm:$0xf]
        %v837 = vld [vmem:[%s8] sm:$0x1]
        %v839 = vlaneseq
        %v840 = vshrl.u32 %v839, 7
        %v841 = vsub.s32 0, %v840
        %v842 = vrot.slane %v837, %v841
        %v852 = vunpack.c.l.b16 %v829
        %v853 = vunpack.c.l.b16 %v830
        %v854 = vunpack.c.l.b16 %v831
        %v855 = vunpack.c.l.b16 %v832
        %v856 = vunpack.c.l.b16 %v833
        %v857 = vunpack.c.l.b16 %v834
        %v858 = vunpack.c.l.b16 %v835
        %v859 = vunpack.c.l.b16 %v836
        %v860 = vpack.c.b16 %v853, %v852
        %v861 = vpack.c.b16 %v855, %v854
        %v862 = vpack.c.b16 %v857, %v856
        %v863 = vpack.c.b16 %v859, %v858
        %vm868 = vcmask 523264
        %v870 = vsel %vm868, %v822, 0
        %v873 = vsel %vm868, %v823, 0
        %v876 = vsel %vm868, %v824, 0
        %v879 = vsel %vm868, %v825, 0
        %v882 = vsel %vm868, %v826, 0
        %v885 = vsel %vm868, %v827, 0
        %v888 = vsel %vm868, %v828, 0
        %890 = vmatprep.subr.bf16.mxu0 0
        %891 = vmatpush1.bf16.msra.mxu0 %v860
        %892 = vmatprep.subr.bf16.mxu0 0
        %893 = vmatpush1.bf16.msra.mxu0 %v861
        %894 = vmatprep.subr.bf16.mxu0 0
        %895 = vmatpush1.bf16.msra.mxu0 %v862
        %896 = vmatprep.subr.bf16.mxu0 0
        %897 = vmatpush1.bf16.msra.mxu0 %v863
        %898 = vmatprep.subr.bf16.mxu0 0
        %899 = vmatpush1.bf16.msra.mxu0 0
        %900 = vmatprep.subr.bf16.mxu0 0
        %901 = vmatpush1.bf16.msra.mxu0 0
        %902 = vmatprep.subr.bf16.mxu0 0
        %903 = vmatpush1.bf16.msra.mxu0 0
        %904 = vmatprep.subr.bf16.mxu0 0
        %905 = vmatpush1.bf16.msra.mxu0 0
        %906 = vmatprep.subr.bf16.mxu0 0
        %907 = vmatpush1.bf16.msra.mxu0 0
        %908 = vmatprep.subr.bf16.mxu0 0
        %909 = vmatpush1.bf16.msra.mxu0 0
        %910 = vmatprep.subr.bf16.mxu0 0
        %911 = vmatpush1.bf16.msra.mxu0 0
        %912 = vmatprep.subr.bf16.mxu0 0
        %913 = vmatpush1.bf16.msra.mxu0 0
        %914 = vmatprep.subr.bf16.mxu0 0
        %915 = vmatpush1.bf16.msra.mxu0 0
        %916 = vmatprep.subr.bf16.mxu0 0
        %917 = vmatpush1.bf16.msra.mxu0 0
        %918 = vmatprep.subr.bf16.mxu0 0
        %919 = vmatpush1.bf16.msra.mxu0 0
        %920 = vmatprep.subr.bf16.mxu0 0
        %921 = vmatpush1.bf16.msra.mxu0 0
        %922 = vmatprep.mubr.bf16.mxu0 0
        %923 = vmatmul.mubr.bf16.gmra.mrb[0].mxu0 %v870
        %v924 = vpop.f32.mrb[0].mxu0
        %v925 = vadd.f32 %v842, %v924
        %v926 = vpop.f32.mrb[0].mxu0
        %v927 = vpop.f32.mrb[0].mxu0
        %v928 = vadd.f32 %v842, %v927
        %v929 = vpop.f32.mrb[0].mxu0
        %930 = vmatprep.mubr.bf16.mxu0 0
        %931 = vmatmul.mubr.bf16.gmra.mrb[0].mxu0 %v873
        %v932 = vpop.f32.mrb[0].mxu0
        %v933 = vadd.f32 %v842, %v932
        %v934 = vpop.f32.mrb[0].mxu0
        %v935 = vpop.f32.mrb[0].mxu0
        %v936 = vadd.f32 %v842, %v935
        %v937 = vpop.f32.mrb[0].mxu0
        %938 = vmatprep.mubr.bf16.mxu0 0
        %939 = vmatmul.mubr.bf16.gmra.mrb[0].mxu0 %v876
        %v940 = vpop.f32.mrb[0].mxu0
        %v941 = vadd.f32 %v842, %v940
        %v942 = vpop.f32.mrb[0].mxu0
        %v943 = vpop.f32.mrb[0].mxu0
        %v944 = vadd.f32 %v842, %v943
        %v945 = vpop.f32.mrb[0].mxu0
        %946 = vmatprep.mubr.bf16.mxu0 0
        %947 = vmatmul.mubr.bf16.gmra.mrb[0].mxu0 %v879
        %v948 = vpop.f32.mrb[0].mxu0
        %v949 = vadd.f32 %v842, %v948
        %v950 = vpop.f32.mrb[0].mxu0
        %v951 = vpop.f32.mrb[0].mxu0
        %v952 = vadd.f32 %v842, %v951
        %v953 = vpop.f32.mrb[0].mxu0
        %954 = vmatprep.mubr.bf16.mxu0 0
        %955 = vmatmul.mubr.bf16.gmra.mrb[0].mxu0 %v882
        %v956 = vpop.f32.mrb[0].mxu0
        %v957 = vadd.f32 %v842, %v956
        %v958 = vpop.f32.mrb[0].mxu0
        %v959 = vpop.f32.mrb[0].mxu0
        %v960 = vadd.f32 %v842, %v959
        %v961 = vpop.f32.mrb[0].mxu0
        %962 = vmatprep.mubr.bf16.mxu0 0
        %963 = vmatmul.mubr.bf16.gmra.mrb[0].mxu0 %v885
        %v964 = vpop.f32.mrb[0].mxu0
        %v965 = vadd.f32 %v842, %v964
        %v966 = vpop.f32.mrb[0].mxu0
        %v967 = vpop.f32.mrb[0].mxu0
        %v968 = vadd.f32 %v842, %v967
        %v969 = vpop.f32.mrb[0].mxu0
        %970 = vmatprep.mubr.bf16.mxu0 0
        %971 = vmatmul.mubr.bf16.gmra.mrb[0].mxu0 %v888
        %v972 = vpop.f32.mrb[0].mxu0
        %v973 = vadd.f32 %v842, %v972
        %v974 = vpop.f32.mrb[0].mxu0
        %v975 = vpop.f32.mrb[0].mxu0
        %v976 = vpop.f32.mrb[0].mxu0
        %977 = vdwg.mxu0
        %v978 = vmax.f32 %v925, 0.0
        %v979 = vmax.f32 %v928, 0.0
        %v980 = vmax.f32 %v933, 0.0
        %v981 = vmax.f32 %v936, 0.0
        %v982 = vmax.f32 %v941, 0.0
        %v983 = vmax.f32 %v944, 0.0
        %v984 = vmax.f32 %v949, 0.0
        %v985 = vmax.f32 %v952, 0.0
        %v986 = vmax.f32 %v957, 0.0
        %v987 = vmax.f32 %v960, 0.0
        %v988 = vmax.f32 %v965, 0.0
        %v989 = vmax.f32 %v968, 0.0
        %v990 = vmax.f32 %v973, 0.0
        %v991 = vpack.c.bf16 %v979, %v978
        %v992 = vpack.c.bf16 %v981, %v980
        %v993 = vpack.c.bf16 %v983, %v982
        %v994 = vpack.c.bf16 %v985, %v984
        %v995 = vpack.c.bf16 %v987, %v986
        %v996 = vpack.c.bf16 %v989, %v988
        %v997 = vpack.c.bf16 %v990, %v990
        %v998 = vld [vmem:[%s3] sm:$0xff]
        %v999 = vld [vmem:[%s3 + $0x8] sm:$0xff]
        %v1000 = vld [vmem:[%s3 + $0x10] sm:$0xff]
        %v1001 = vld [vmem:[%s3 + $0x18] sm:$0xff]
        %v1002 = vld [vmem:[%s3 + $0x20] sm:$0xff]
        %v1003 = vld [vmem:[%s3 + $0x28] sm:$0xff]
        %v1004 = vld [vmem:[%s3 + $0x30] sm:$0xff]
        %v1005 = vld [vmem:[%s3 + $0x38] sm:$0xff]
        %v1006 = vld [vmem:[%s3 + $0x40] sm:$0xff]
        %v1007 = vld [vmem:[%s3 + $0x48] sm:$0xff]
        %v1008 = vld [vmem:[%s3 + $0x50] sm:$0xff]
        %v1009 = vld [vmem:[%s3 + $0x58] sm:$0xff]
        %v1010 = vld [vmem:[%s3 + $0x60] sm:$0xff]
        %v1011 = vld [vmem:[%s3 + $0x68] sm:$0xff]
        %v1012 = vld [vmem:[%s3 + $0x70] sm:$0xff]
        %v1013 = vld [vmem:[%s3 + $0x78] sm:$0xff]
        %v1014 = vld [vmem:[%s9] sm:$0x3]
        %v1016 = vlaneseq
        %v1017 = vshrl.u32 %v1016, 7
        %v1018 = vsub.s32 0, %v1017
        %v1019 = vrot.slane %v1014, %v1018
        %v1020 = vlaneseq
        %v1021 = vshrl.u32 %v1020, 7
        %v1022 = vsub.s32 1, %v1021
        %v1023 = vrot.slane %v1014, %v1022
        %v1042 = vunpack.c.l.b16 %v998
        %v1043 = vunpack.c.h.b16 %v998
        %v1044 = vunpack.c.l.b16 %v999
        %v1045 = vunpack.c.h.b16 %v999
        %v1046 = vunpack.c.l.b16 %v1000
        %v1047 = vunpack.c.h.b16 %v1000
        %v1048 = vunpack.c.l.b16 %v1001
        %v1049 = vunpack.c.h.b16 %v1001
        %v1050 = vunpack.c.l.b16 %v1002
        %v1051 = vunpack.c.h.b16 %v1002
        %v1052 = vunpack.c.l.b16 %v1003
        %v1053 = vunpack.c.h.b16 %v1003
        %v1054 = vunpack.c.l.b16 %v1004
        %v1055 = vunpack.c.h.b16 %v1004
        %v1056 = vunpack.c.l.b16 %v1005
        %v1057 = vunpack.c.h.b16 %v1005
        %v1058 = vunpack.c.l.b16 %v1006
        %v1059 = vunpack.c.h.b16 %v1006
        %v1060 = vunpack.c.l.b16 %v1007
        %v1061 = vunpack.c.h.b16 %v1007
        %v1062 = vunpack.c.l.b16 %v1008
        %v1063 = vunpack.c.h.b16 %v1008
        %v1064 = vunpack.c.l.b16 %v1009
        %v1065 = vunpack.c.h.b16 %v1009
        %v1066 = vunpack.c.l.b16 %v1010
        %v1067 = vunpack.c.h.b16 %v1010
        %v1068 = vunpack.c.l.b16 %v1011
        %v1069 = vunpack.c.h.b16 %v1011
        %v1070 = vunpack.c.l.b16 %v1012
        %v1071 = vunpack.c.h.b16 %v1012
        %v1072 = vunpack.c.l.b16 %v1013
        %v1073 = vunpack.c.h.b16 %v1013
        %v1074 = vpack.c.b16 %v1044, %v1042
        %v1075 = vpack.c.b16 %v1045, %v1043
        %v1076 = vpack.c.b16 %v1048, %v1046
        %v1077 = vpack.c.b16 %v1049, %v1047
        %v1078 = vpack.c.b16 %v1052, %v1050
        %v1079 = vpack.c.b16 %v1053, %v1051
        %v1080 = vpack.c.b16 %v1056, %v1054
        %v1081 = vpack.c.b16 %v1057, %v1055
        %v1082 = vpack.c.b16 %v1060, %v1058
        %v1083 = vpack.c.b16 %v1061, %v1059
        %v1084 = vpack.c.b16 %v1064, %v1062
        %v1085 = vpack.c.b16 %v1065, %v1063
        %v1086 = vpack.c.b16 %v1068, %v1066
        %v1087 = vpack.c.b16 %v1069, %v1067
        %v1088 = vpack.c.b16 %v1072, %v1070
        %v1089 = vpack.c.b16 %v1073, %v1071
        %1106 = vmatprep.subr.bf16.mxu0 %v1075
        %1107 = vmatpush1.bf16.msra.mxu0 %v1074
        %1108 = vmatprep.subr.bf16.mxu0 %v1077
        %1109 = vmatpush1.bf16.msra.mxu0 %v1076
        %1110 = vmatprep.subr.bf16.mxu0 %v1079
        %1111 = vmatpush1.bf16.msra.mxu0 %v1078
        %1112 = vmatprep.subr.bf16.mxu0 %v1081
        %1113 = vmatpush1.bf16.msra.mxu0 %v1080
        %1114 = vmatprep.subr.bf16.mxu0 %v1083
        %1115 = vmatpush1.bf16.msra.mxu0 %v1082
        %1116 = vmatprep.subr.bf16.mxu0 %v1085
        %1117 = vmatpush1.bf16.msra.mxu0 %v1084
        %1118 = vmatprep.subr.bf16.mxu0 %v1087
        %1119 = vmatpush1.bf16.msra.mxu0 %v1086
        %1120 = vmatprep.subr.bf16.mxu0 %v1089
        %1121 = vmatpush1.bf16.msra.mxu0 %v1088
        %1122 = vmatprep.subr.bf16.mxu0 0
        %1123 = vmatpush1.bf16.msra.mxu0 0
        %1124 = vmatprep.subr.bf16.mxu0 0
        %1125 = vmatpush1.bf16.msra.mxu0 0
        %1126 = vmatprep.subr.bf16.mxu0 0
        %1127 = vmatpush1.bf16.msra.mxu0 0
        %1128 = vmatprep.subr.bf16.mxu0 0
        %1129 = vmatpush1.bf16.msra.mxu0 0
        %1130 = vmatprep.subr.bf16.mxu0 0
        %1131 = vmatpush1.bf16.msra.mxu0 0
        %1132 = vmatprep.subr.bf16.mxu0 0
        %1133 = vmatpush1.bf16.msra.mxu0 0
        %1134 = vmatprep.subr.bf16.mxu0 0
        %1135 = vmatpush1.bf16.msra.mxu0 0
        %1136 = vmatprep.subr.bf16.mxu0 0
        %1137 = vmatpush1.bf16.msra.mxu0 0
        %1138 = vmatprep.mubr.bf16.mxu0 0
        %1139 = vmatmul.mubr.bf16.gmra.mrb[0].mxu0 %v991
        %v1140 = vpop.f32.mrb[0].mxu0
        %v1141 = vadd.f32 %v1019, %v1140
        %v1142 = vpop.f32.mrb[0].mxu0
        %v1143 = vadd.f32 %v1023, %v1142
        %v1144 = vpop.f32.mrb[0].mxu0
        %v1145 = vadd.f32 %v1019, %v1144
        %v1146 = vpop.f32.mrb[0].mxu0
        %v1147 = vadd.f32 %v1023, %v1146
        %1148 = vmatprep.mubr.bf16.mxu0 0
        %1149 = vmatmul.mubr.bf16.gmra.mrb[0].mxu0 %v992
        %v1150 = vpop.f32.mrb[0].mxu0
        %v1151 = vadd.f32 %v1019, %v1150
        %v1152 = vpop.f32.mrb[0].mxu0
        %v1153 = vadd.f32 %v1023, %v1152
        %v1154 = vpop.f32.mrb[0].mxu0
        %v1155 = vadd.f32 %v1019, %v1154
        %v1156 = vpop.f32.mrb[0].mxu0
        %v1157 = vadd.f32 %v1023, %v1156
        %1158 = vmatprep.mubr.bf16.mxu0 0
        %1159 = vmatmul.mubr.bf16.gmra.mrb[0].mxu0 %v993
        %v1160 = vpop.f32.mrb[0].mxu0
        %v1161 = vadd.f32 %v1019, %v1160
        %v1162 = vpop.f32.mrb[0].mxu0
        %v1163 = vadd.f32 %v1023, %v1162
        %v1164 = vpop.f32.mrb[0].mxu0
        %v1165 = vadd.f32 %v1019, %v1164
        %v1166 = vpop.f32.mrb[0].mxu0
        %v1167 = vadd.f32 %v1023, %v1166
        %1168 = vmatprep.mubr.bf16.mxu0 0
        %1169 = vmatmul.mubr.bf16.gmra.mrb[0].mxu0 %v994
        %v1170 = vpop.f32.mrb[0].mxu0
        %v1171 = vadd.f32 %v1019, %v1170
        %v1172 = vpop.f32.mrb[0].mxu0
        %v1173 = vadd.f32 %v1023, %v1172
        %v1174 = vpop.f32.mrb[0].mxu0
        %v1175 = vadd.f32 %v1019, %v1174
        %v1176 = vpop.f32.mrb[0].mxu0
        %v1177 = vadd.f32 %v1023, %v1176
        %1178 = vmatprep.mubr.bf16.mxu0 0
        %1179 = vmatmul.mubr.bf16.gmra.mrb[0].mxu0 %v995
        %v1180 = vpop.f32.mrb[0].mxu0
        %v1181 = vadd.f32 %v1019, %v1180
        %v1182 = vpop.f32.mrb[0].mxu0
        %v1183 = vadd.f32 %v1023, %v1182
        %v1184 = vpop.f32.mrb[0].mxu0
        %v1185 = vadd.f32 %v1019, %v1184
        %v1186 = vpop.f32.mrb[0].mxu0
        %v1187 = vadd.f32 %v1023, %v1186
        %1188 = vmatprep.mubr.bf16.mxu0 0
        %1189 = vmatmul.mubr.bf16.gmra.mrb[0].mxu0 %v996
        %v1190 = vpop.f32.mrb[0].mxu0
        %v1191 = vadd.f32 %v1019, %v1190
        %v1192 = vpop.f32.mrb[0].mxu0
        %v1193 = vadd.f32 %v1023, %v1192
        %v1194 = vpop.f32.mrb[0].mxu0
        %v1195 = vadd.f32 %v1019, %v1194
        %v1196 = vpop.f32.mrb[0].mxu0
        %v1197 = vadd.f32 %v1023, %v1196
        %1198 = vmatprep.mubr.bf16.mxu0 0
        %1199 = vmatmul.mubr.bf16.gmra.mrb[0].mxu0 %v997
        %v1200 = vpop.f32.mrb[0].mxu0
        %v1201 = vadd.f32 %v1019, %v1200
        %v1202 = vpop.f32.mrb[0].mxu0
        %v1203 = vadd.f32 %v1023, %v1202
        %v1204 = vpop.f32.mrb[0].mxu0
        %v1205 = vpop.f32.mrb[0].mxu0
        %1206 = vdwg.mxu0
        %v1207 = vmax.f32 %v1141, 0.0
        %v1208 = vmax.f32 %v1143, 0.0
        %v1209 = vmax.f32 %v1145, 0.0
        %v1210 = vmax.f32 %v1147, 0.0
        %v1211 = vmax.f32 %v1151, 0.0
        %v1212 = vmax.f32 %v1153, 0.0
        %v1213 = vmax.f32 %v1155, 0.0
        %v1214 = vmax.f32 %v1157, 0.0
        %v1215 = vmax.f32 %v1161, 0.0
        %v1216 = vmax.f32 %v1163, 0.0
        %v1217 = vmax.f32 %v1165, 0.0
        %v1218 = vmax.f32 %v1167, 0.0
        %v1219 = vmax.f32 %v1171, 0.0
        %v1220 = vmax.f32 %v1173, 0.0
        %v1221 = vmax.f32 %v1175, 0.0
        %v1222 = vmax.f32 %v1177, 0.0
        %v1223 = vmax.f32 %v1181, 0.0
        %v1224 = vmax.f32 %v1183, 0.0
        %v1225 = vmax.f32 %v1185, 0.0
        %v1226 = vmax.f32 %v1187, 0.0
        %v1227 = vmax.f32 %v1191, 0.0
        %v1228 = vmax.f32 %v1193, 0.0
        %v1229 = vmax.f32 %v1195, 0.0
        %v1230 = vmax.f32 %v1197, 0.0
        %v1231 = vmax.f32 %v1201, 0.0
        %v1232 = vmax.f32 %v1203, 0.0
        %v1233 = vpack.c.bf16 %v1209, %v1207
        %v1234 = vpack.c.bf16 %v1210, %v1208
        %v1235 = vpack.c.bf16 %v1213, %v1211
        %v1236 = vpack.c.bf16 %v1214, %v1212
        %v1237 = vpack.c.bf16 %v1217, %v1215
        %v1238 = vpack.c.bf16 %v1218, %v1216
        %v1239 = vpack.c.bf16 %v1221, %v1219
        %v1240 = vpack.c.bf16 %v1222, %v1220
        %v1241 = vpack.c.bf16 %v1225, %v1223
        %v1242 = vpack.c.bf16 %v1226, %v1224
        %v1243 = vpack.c.bf16 %v1229, %v1227
        %v1244 = vpack.c.bf16 %v1230, %v1228
        %v1245 = vpack.c.bf16 %v1231, %v1231
        %v1246 = vpack.c.bf16 %v1232, %v1232
        %v1247 = vld [vmem:[#allocation2] sm:$0xff]
        %v1248 = vld [vmem:[#allocation2 + $0x8] sm:$0xff]
        %v1249 = vld [vmem:[#allocation2 + $0x10] sm:$0xff]
        %v1250 = vld [vmem:[#allocation2 + $0x18] sm:$0xff]
        %v1251 = vld [vmem:[#allocation2 + $0x20] sm:$0xff]
        %v1252 = vld [vmem:[#allocation2 + $0x28] sm:$0xff]
        %v1253 = vld [vmem:[#allocation2 + $0x30] sm:$0xff]
        %v1254 = vld [vmem:[#allocation2 + $0x38] sm:$0xff]
        %v1255 = vld [vmem:[#allocation2 + $0x40] sm:$0xff]
        %v1256 = vld [vmem:[#allocation2 + $0x48] sm:$0xff]
        %v1257 = vld [vmem:[#allocation2 + $0x50] sm:$0xff]
        %v1258 = vld [vmem:[#allocation2 + $0x58] sm:$0xff]
        %v1259 = vld [vmem:[#allocation2 + $0x60] sm:$0xff]
        %v1260 = vld [vmem:[#allocation2 + $0x68] sm:$0xff]
        %v1261 = vld [vmem:[#allocation2 + $0x70] sm:$0xff]
        %v1262 = vld [vmem:[#allocation2 + $0x78] sm:$0xff]
        %v1263 = vld [vmem:[#allocation2 + $0x80] sm:$0xff]
        %v1264 = vld [vmem:[#allocation2 + $0x88] sm:$0xff]
        %v1265 = vld [vmem:[#allocation2 + $0x90] sm:$0xff]
        %v1266 = vld [vmem:[#allocation2 + $0x98] sm:$0xff]
        %v1267 = vld [vmem:[#allocation2 + $0xa0] sm:$0xff]
        %v1268 = vld [vmem:[#allocation2 + $0xa8] sm:$0xff]
        %v1269 = vld [vmem:[#allocation2 + $0xb0] sm:$0xff]
        %v1270 = vld [vmem:[#allocation2 + $0xb8] sm:$0xff]
        %v1271 = vld [vmem:[#allocation2 + $0xc0] sm:$0xff]
        %v1272 = vld [vmem:[#allocation2 + $0xc8] sm:$0xff]
        %v1273 = vld [vmem:[#allocation2 + $0xd0] sm:$0xff]
        %v1274 = vld [vmem:[#allocation2 + $0xd8] sm:$0xff]
        %v1275 = vld [vmem:[#allocation2 + $0xe0] sm:$0xff]
        %v1276 = vld [vmem:[#allocation2 + $0xe8] sm:$0xff]
        %v1277 = vld [vmem:[#allocation2 + $0xf0] sm:$0xff]
        %v1278 = vld [vmem:[#allocation2 + $0xf8] sm:$0xff]
        %v1279 = vld [vmem:[#allocation2 + $0x100] sm:$0xff]
        %v1280 = vld [vmem:[#allocation2 + $0x108] sm:$0xff]
        %v1281 = vld [vmem:[#allocation2 + $0x110] sm:$0xff]
        %v1282 = vld [vmem:[#allocation2 + $0x118] sm:$0xff]
        %v1283 = vld [vmem:[#allocation2 + $0x120] sm:$0xff]
        %v1284 = vld [vmem:[#allocation2 + $0x128] sm:$0xff]
        %v1285 = vld [vmem:[#allocation2 + $0x130] sm:$0xff]
        %v1286 = vld [vmem:[#allocation2 + $0x138] sm:$0xff]
        %v1287 = vld [vmem:[#allocation2 + $0x140] sm:$0xff]
        %v1288 = vld [vmem:[#allocation2 + $0x148] sm:$0xff]
        %v1289 = vld [vmem:[#allocation2 + $0x150] sm:$0xff]
        %v1290 = vld [vmem:[#allocation2 + $0x158] sm:$0xff]
        %v1291 = vld [vmem:[#allocation2 + $0x160] sm:$0xff]
        %v1292 = vld [vmem:[#allocation2 + $0x168] sm:$0xff]
        %v1293 = vld [vmem:[#allocation2 + $0x170] sm:$0xff]
        %v1294 = vld [vmem:[#allocation2 + $0x178] sm:$0xff]
        %v1295 = vld [vmem:[#allocation2 + $0x180] sm:$0xff]
        %v1296 = vld [vmem:[#allocation2 + $0x188] sm:$0xff]
        %v1297 = vld [vmem:[#allocation2 + $0x190] sm:$0xff]
        %v1298 = vld [vmem:[#allocation2 + $0x198] sm:$0xff]
        %v1299 = vld [vmem:[#allocation2 + $0x1a0] sm:$0xff]
        %v1300 = vld [vmem:[#allocation2 + $0x1a8] sm:$0xff]
        %v1301 = vld [vmem:[#allocation2 + $0x1b0] sm:$0xff]
        %v1302 = vld [vmem:[#allocation2 + $0x1b8] sm:$0xff]
        %v1303 = vld [vmem:[#allocation2 + $0x1c0] sm:$0xff]
        %v1304 = vld [vmem:[#allocation2 + $0x1c8] sm:$0xff]
        %v1305 = vld [vmem:[#allocation2 + $0x1d0] sm:$0xff]
        %v1306 = vld [vmem:[#allocation2 + $0x1d8] sm:$0xff]
        %v1307 = vld [vmem:[#allocation2 + $0x1e0] sm:$0xff]
        %v1308 = vld [vmem:[#allocation2 + $0x1e8] sm:$0xff]
        %v1309 = vld [vmem:[#allocation2 + $0x1f0] sm:$0xff]
        %v1310 = vld [vmem:[#allocation2 + $0x1f8] sm:$0xff]
        %v1311 = vld [vmem:[%s10] sm:$0xf]
        %v1313 = vlaneseq
        %v1314 = vshrl.u32 %v1313, 7
        %v1315 = vsub.s32 0, %v1314
        %v1316 = vrot.slane %v1311, %v1315
        %v1317 = vlaneseq
        %v1318 = vshrl.u32 %v1317, 7
        %v1319 = vsub.s32 1, %v1318
        %v1320 = vrot.slane %v1311, %v1319
        %v1321 = vlaneseq
        %v1322 = vshrl.u32 %v1321, 7
        %v1323 = vsub.s32 2, %v1322
        %v1324 = vrot.slane %v1311, %v1323
        %v1325 = vlaneseq
        %v1326 = vshrl.u32 %v1325, 7
        %v1327 = vsub.s32 3, %v1326
        %v1328 = vrot.slane %v1311, %v1327
        %v1397 = vunpack.c.l.b16 %v1247
        %v1398 = vunpack.c.h.b16 %v1247
        %v1399 = vunpack.c.l.b16 %v1248
        %v1400 = vunpack.c.h.b16 %v1248
        %v1401 = vunpack.c.l.b16 %v1249
        %v1402 = vunpack.c.h.b16 %v1249
        %v1403 = vunpack.c.l.b16 %v1250
        %v1404 = vunpack.c.h.b16 %v1250
        %v1405 = vunpack.c.l.b16 %v1251
        %v1406 = vunpack.c.h.b16 %v1251
        %v1407 = vunpack.c.l.b16 %v1252
        %v1408 = vunpack.c.h.b16 %v1252
        %v1409 = vunpack.c.l.b16 %v1253
        %v1410 = vunpack.c.h.b16 %v1253
        %v1411 = vunpack.c.l.b16 %v1254
        %v1412 = vunpack.c.h.b16 %v1254
        %v1413 = vunpack.c.l.b16 %v1255
        %v1414 = vunpack.c.h.b16 %v1255
        %v1415 = vunpack.c.l.b16 %v1256
        %v1416 = vunpack.c.h.b16 %v1256
        %v1417 = vunpack.c.l.b16 %v1257
        %v1418 = vunpack.c.h.b16 %v1257
        %v1419 = vunpack.c.l.b16 %v1258
        %v1420 = vunpack.c.h.b16 %v1258
        %v1421 = vunpack.c.l.b16 %v1259
        %v1422 = vunpack.c.h.b16 %v1259
        %v1423 = vunpack.c.l.b16 %v1260
        %v1424 = vunpack.c.h.b16 %v1260
        %v1425 = vunpack.c.l.b16 %v1261
        %v1426 = vunpack.c.h.b16 %v1261
        %v1427 = vunpack.c.l.b16 %v1262
        %v1428 = vunpack.c.h.b16 %v1262
        %v1429 = vunpack.c.l.b16 %v1263
        %v1430 = vunpack.c.h.b16 %v1263
        %v1431 = vunpack.c.l.b16 %v1264
        %v1432 = vunpack.c.h.b16 %v1264
        %v1433 = vunpack.c.l.b16 %v1265
        %v1434 = vunpack.c.h.b16 %v1265
        %v1435 = vunpack.c.l.b16 %v1266
        %v1436 = vunpack.c.h.b16 %v1266
        %v1437 = vunpack.c.l.b16 %v1267
        %v1438 = vunpack.c.h.b16 %v1267
        %v1439 = vunpack.c.l.b16 %v1268
        %v1440 = vunpack.c.h.b16 %v1268
        %v1441 = vunpack.c.l.b16 %v1269
        %v1442 = vunpack.c.h.b16 %v1269
        %v1443 = vunpack.c.l.b16 %v1270
        %v1444 = vunpack.c.h.b16 %v1270
        %v1445 = vunpack.c.l.b16 %v1271
        %v1446 = vunpack.c.h.b16 %v1271
        %v1447 = vunpack.c.l.b16 %v1272
        %v1448 = vunpack.c.h.b16 %v1272
        %v1449 = vunpack.c.l.b16 %v1273
        %v1450 = vunpack.c.h.b16 %v1273
        %v1451 = vunpack.c.l.b16 %v1274
        %v1452 = vunpack.c.h.b16 %v1274
        %v1453 = vunpack.c.l.b16 %v1275
        %v1454 = vunpack.c.h.b16 %v1275
        %v1455 = vunpack.c.l.b16 %v1276
        %v1456 = vunpack.c.h.b16 %v1276
        %v1457 = vunpack.c.l.b16 %v1277
        %v1458 = vunpack.c.h.b16 %v1277
        %v1459 = vunpack.c.l.b16 %v1278
        %v1460 = vunpack.c.h.b16 %v1278
        %v1461 = vunpack.c.l.b16 %v1279
        %v1462 = vunpack.c.h.b16 %v1279
        %v1463 = vunpack.c.l.b16 %v1280
        %v1464 = vunpack.c.h.b16 %v1280
        %v1465 = vunpack.c.l.b16 %v1281
        %v1466 = vunpack.c.h.b16 %v1281
        %v1467 = vunpack.c.l.b16 %v1282
        %v1468 = vunpack.c.h.b16 %v1282
        %v1469 = vunpack.c.l.b16 %v1283
        %v1470 = vunpack.c.h.b16 %v1283
        %v1471 = vunpack.c.l.b16 %v1284
        %v1472 = vunpack.c.h.b16 %v1284
        %v1473 = vunpack.c.l.b16 %v1285
        %v1474 = vunpack.c.h.b16 %v1285
        %v1475 = vunpack.c.l.b16 %v1286
        %v1476 = vunpack.c.h.b16 %v1286
        %v1477 = vunpack.c.l.b16 %v1287
        %v1478 = vunpack.c.h.b16 %v1287
        %v1479 = vunpack.c.l.b16 %v1288
        %v1480 = vunpack.c.h.b16 %v1288
        %v1481 = vunpack.c.l.b16 %v1289
        %v1482 = vunpack.c.h.b16 %v1289
        %v1483 = vunpack.c.l.b16 %v1290
        %v1484 = vunpack.c.h.b16 %v1290
        %v1485 = vunpack.c.l.b16 %v1291
        %v1486 = vunpack.c.h.b16 %v1291
        %v1487 = vunpack.c.l.b16 %v1292
        %v1488 = vunpack.c.h.b16 %v1292
        %v1489 = vunpack.c.l.b16 %v1293
        %v1490 = vunpack.c.h.b16 %v1293
        %v1491 = vunpack.c.l.b16 %v1294
        %v1492 = vunpack.c.h.b16 %v1294
        %v1493 = vunpack.c.l.b16 %v1295
        %v1494 = vunpack.c.h.b16 %v1295
        %v1495 = vunpack.c.l.b16 %v1296
        %v1496 = vunpack.c.h.b16 %v1296
        %v1497 = vunpack.c.l.b16 %v1297
        %v1498 = vunpack.c.h.b16 %v1297
        %v1499 = vunpack.c.l.b16 %v1298
        %v1500 = vunpack.c.h.b16 %v1298
        %v1501 = vunpack.c.l.b16 %v1299
        %v1502 = vunpack.c.h.b16 %v1299
        %v1503 = vunpack.c.l.b16 %v1300
        %v1504 = vunpack.c.h.b16 %v1300
        %v1505 = vunpack.c.l.b16 %v1301
        %v1506 = vunpack.c.h.b16 %v1301
        %v1507 = vunpack.c.l.b16 %v1302
        %v1508 = vunpack.c.h.b16 %v1302
        %v1509 = vunpack.c.l.b16 %v1303
        %v1510 = vunpack.c.h.b16 %v1303
        %v1511 = vunpack.c.l.b16 %v1304
        %v1512 = vunpack.c.h.b16 %v1304
        %v1513 = vunpack.c.l.b16 %v1305
        %v1514 = vunpack.c.h.b16 %v1305
        %v1515 = vunpack.c.l.b16 %v1306
        %v1516 = vunpack.c.h.b16 %v1306
        %v1517 = vunpack.c.l.b16 %v1307
        %v1518 = vunpack.c.h.b16 %v1307
        %v1519 = vunpack.c.l.b16 %v1308
        %v1520 = vunpack.c.h.b16 %v1308
        %v1521 = vunpack.c.l.b16 %v1309
        %v1522 = vunpack.c.h.b16 %v1309
        %v1523 = vunpack.c.l.b16 %v1310
        %v1524 = vunpack.c.h.b16 %v1310
        %v1525 = vpack.c.b16 %v1401, %v1397
        %v1526 = vpack.c.b16 %v1402, %v1398
        %v1527 = vpack.c.b16 %v1403, %v1399
        %v1528 = vpack.c.b16 %v1404, %v1400
        %v1529 = vpack.c.b16 %v1409, %v1405
        %v1530 = vpack.c.b16 %v1410, %v1406
        %v1531 = vpack.c.b16 %v1411, %v1407
        %v1532 = vpack.c.b16 %v1412, %v1408
        %v1533 = vpack.c.b16 %v1417, %v1413
        %v1534 = vpack.c.b16 %v1418, %v1414
        %v1535 = vpack.c.b16 %v1419, %v1415
        %v1536 = vpack.c.b16 %v1420, %v1416
        %v1537 = vpack.c.b16 %v1425, %v1421
        %v1538 = vpack.c.b16 %v1426, %v1422
        %v1539 = vpack.c.b16 %v1427, %v1423
        %v1540 = vpack.c.b16 %v1428, %v1424
        %v1541 = vpack.c.b16 %v1433, %v1429
        %v1542 = vpack.c.b16 %v1434, %v1430
        %v1543 = vpack.c.b16 %v1435, %v1431
        %v1544 = vpack.c.b16 %v1436, %v1432
        %v1545 = vpack.c.b16 %v1441, %v1437
        %v1546 = vpack.c.b16 %v1442, %v1438
        %v1547 = vpack.c.b16 %v1443, %v1439
        %v1548 = vpack.c.b16 %v1444, %v1440
        %v1549 = vpack.c.b16 %v1449, %v1445
        %v1550 = vpack.c.b16 %v1450, %v1446
        %v1551 = vpack.c.b16 %v1451, %v1447
        %v1552 = vpack.c.b16 %v1452, %v1448
        %v1553 = vpack.c.b16 %v1457, %v1453
        %v1554 = vpack.c.b16 %v1458, %v1454
        %v1555 = vpack.c.b16 %v1459, %v1455
        %v1556 = vpack.c.b16 %v1460, %v1456
        %v1557 = vpack.c.b16 %v1465, %v1461
        %v1558 = vpack.c.b16 %v1466, %v1462
        %v1559 = vpack.c.b16 %v1467, %v1463
        %v1560 = vpack.c.b16 %v1468, %v1464
        %v1561 = vpack.c.b16 %v1473, %v1469
        %v1562 = vpack.c.b16 %v1474, %v1470
        %v1563 = vpack.c.b16 %v1475, %v1471
        %v1564 = vpack.c.b16 %v1476, %v1472
        %v1565 = vpack.c.b16 %v1481, %v1477
        %v1566 = vpack.c.b16 %v1482, %v1478
        %v1567 = vpack.c.b16 %v1483, %v1479
        %v1568 = vpack.c.b16 %v1484, %v1480
        %v1569 = vpack.c.b16 %v1489, %v1485
        %v1570 = vpack.c.b16 %v1490, %v1486
        %v1571 = vpack.c.b16 %v1491, %v1487
        %v1572 = vpack.c.b16 %v1492, %v1488
        %v1573 = vpack.c.b16 %v1497, %v1493
        %v1574 = vpack.c.b16 %v1498, %v1494
        %v1575 = vpack.c.b16 %v1499, %v1495
        %v1576 = vpack.c.b16 %v1500, %v1496
        %v1577 = vpack.c.b16 %v1505, %v1501
        %v1578 = vpack.c.b16 %v1506, %v1502
        %v1579 = vpack.c.b16 %v1507, %v1503
        %v1580 = vpack.c.b16 %v1508, %v1504
        %v1581 = vpack.c.b16 %v1513, %v1509
        %v1582 = vpack.c.b16 %v1514, %v1510
        %v1583 = vpack.c.b16 %v1515, %v1511
        %v1584 = vpack.c.b16 %v1516, %v1512
        %v1585 = vpack.c.b16 %v1521, %v1517
        %v1586 = vpack.c.b16 %v1522, %v1518
        %v1587 = vpack.c.b16 %v1523, %v1519
        %v1588 = vpack.c.b16 %v1524, %v1520
        %1653 = vmatprep.subr.bf16.mxu0 %v1526
        %1654 = vmatpush1.bf16.msra.mxu0 %v1525
        %1655 = vmatprep.subr.bf16.mxu0 %v1530
        %1656 = vmatpush1.bf16.msra.mxu0 %v1529
        %1657 = vmatprep.subr.bf16.mxu0 %v1534
        %1658 = vmatpush1.bf16.msra.mxu0 %v1533
        %1659 = vmatprep.subr.bf16.mxu0 %v1538
        %1660 = vmatpush1.bf16.msra.mxu0 %v1537
        %1661 = vmatprep.subr.bf16.mxu0 %v1542
        %1662 = vmatpush1.bf16.msra.mxu0 %v1541
        %1663 = vmatprep.subr.bf16.mxu0 %v1546
        %1664 = vmatpush1.bf16.msra.mxu0 %v1545
        %1665 = vmatprep.subr.bf16.mxu0 %v1550
        %1666 = vmatpush1.bf16.msra.mxu0 %v1549
        %1667 = vmatprep.subr.bf16.mxu0 %v1554
        %1668 = vmatpush1.bf16.msra.mxu0 %v1553
        %1669 = vmatprep.subr.bf16.mxu0 %v1558
        %1670 = vmatpush1.bf16.msra.mxu0 %v1557
        %1671 = vmatprep.subr.bf16.mxu0 %v1562
        %1672 = vmatpush1.bf16.msra.mxu0 %v1561
        %1673 = vmatprep.subr.bf16.mxu0 %v1566
        %1674 = vmatpush1.bf16.msra.mxu0 %v1565
        %1675 = vmatprep.subr.bf16.mxu0 %v1570
        %1676 = vmatpush1.bf16.msra.mxu0 %v1569
        %1677 = vmatprep.subr.bf16.mxu0 %v1574
        %1678 = vmatpush1.bf16.msra.mxu0 %v1573
        %1679 = vmatprep.subr.bf16.mxu0 %v1578
        %1680 = vmatpush1.bf16.msra.mxu0 %v1577
        %1681 = vmatprep.subr.bf16.mxu0 %v1582
        %1682 = vmatpush1.bf16.msra.mxu0 %v1581
        %1683 = vmatprep.subr.bf16.mxu0 %v1586
        %1684 = vmatpush1.bf16.msra.mxu0 %v1585
        %1685 = vmatprep.mubr.bf16.mxu0 %v1234
        %1686 = vmatmul.mubr.bf16.gmra.mrb[0].mxu0 %v1233
        %v1687 = vpop.f32.mrb[0].mxu0
        %v1688 = vadd.f32 %v1316, %v1687
        %v1689 = vpop.f32.mrb[0].mxu0
        %v1690 = vadd.f32 %v1320, %v1689
        %v1691 = vpop.f32.mrb[0].mxu0
        %v1692 = vadd.f32 %v1316, %v1691
        %v1693 = vpop.f32.mrb[0].mxu0
        %v1694 = vadd.f32 %v1320, %v1693
        %1695 = vmatprep.mubr.bf16.mxu0 %v1236
        %1696 = vmatmul.mubr.bf16.gmra.mrb[0].mxu0 %v1235
        %v1697 = vpop.f32.mrb[0].mxu0
        %v1698 = vadd.f32 %v1316, %v1697
        %v1699 = vpop.f32.mrb[0].mxu0
        %v1700 = vadd.f32 %v1320, %v1699
        %v1701 = vpop.f32.mrb[0].mxu0
        %v1702 = vadd.f32 %v1316, %v1701
        %v1703 = vpop.f32.mrb[0].mxu0
        %v1704 = vadd.f32 %v1320, %v1703
        %1705 = vmatprep.mubr.bf16.mxu0 %v1238
        %1706 = vmatmul.mubr.bf16.gmra.mrb[0].mxu0 %v1237
        %v1707 = vpop.f32.mrb[0].mxu0
        %v1708 = vadd.f32 %v1316, %v1707
        %v1709 = vpop.f32.mrb[0].mxu0
        %v1710 = vadd.f32 %v1320, %v1709
        %v1711 = vpop.f32.mrb[0].mxu0
        %v1712 = vadd.f32 %v1316, %v1711
        %v1713 = vpop.f32.mrb[0].mxu0
        %v1714 = vadd.f32 %v1320, %v1713
        %1715 = vmatprep.mubr.bf16.mxu0 %v1240
        %1716 = vmatmul.mubr.bf16.gmra.mrb[0].mxu0 %v1239
        %v1717 = vpop.f32.mrb[0].mxu0
        %v1718 = vadd.f32 %v1316, %v1717
        %v1719 = vpop.f32.mrb[0].mxu0
        %v1720 = vadd.f32 %v1320, %v1719
        %v1721 = vpop.f32.mrb[0].mxu0
        %v1722 = vadd.f32 %v1316, %v1721
        %v1723 = vpop.f32.mrb[0].mxu0
        %v1724 = vadd.f32 %v1320, %v1723
        %1725 = vmatprep.mubr.bf16.mxu0 %v1242
        %1726 = vmatmul.mubr.bf16.gmra.mrb[0].mxu0 %v1241
        %v1727 = vpop.f32.mrb[0].mxu0
        %v1728 = vadd.f32 %v1316, %v1727
        %v1729 = vpop.f32.mrb[0].mxu0
        %v1730 = vadd.f32 %v1320, %v1729
        %v1731 = vpop.f32.mrb[0].mxu0
        %v1732 = vadd.f32 %v1316, %v1731
        %v1733 = vpop.f32.mrb[0].mxu0
        %v1734 = vadd.f32 %v1320, %v1733
        %1735 = vmatprep.mubr.bf16.mxu0 %v1244
        %1736 = vmatmul.mubr.bf16.gmra.mrb[0].mxu0 %v1243
        %v1737 = vpop.f32.mrb[0].mxu0
        %v1738 = vadd.f32 %v1316, %v1737
        %v1739 = vpop.f32.mrb[0].mxu0
        %v1740 = vadd.f32 %v1320, %v1739
        %v1741 = vpop.f32.mrb[0].mxu0
        %v1742 = vadd.f32 %v1316, %v1741
        %v1743 = vpop.f32.mrb[0].mxu0
        %v1744 = vadd.f32 %v1320, %v1743
        %1745 = vmatprep.mubr.bf16.mxu0 %v1246
        %1746 = vmatmul.mubr.bf16.gmra.mrb[0].mxu0 %v1245
        %v1747 = vpop.f32.mrb[0].mxu0
        %v1748 = vadd.f32 %v1316, %v1747
        %v1749 = vpop.f32.mrb[0].mxu0
        %v1750 = vadd.f32 %v1320, %v1749
        %v1751 = vpop.f32.mrb[0].mxu0
        %v1752 = vpop.f32.mrb[0].mxu0
        %1753 = vdwg.mxu0
        %1754 = vmatprep.subr.bf16.mxu0 %v1528
        %1755 = vmatpush1.bf16.msra.mxu0 %v1527
        %1756 = vmatprep.subr.bf16.mxu0 %v1532
        %1757 = vmatpush1.bf16.msra.mxu0 %v1531
        %1758 = vmatprep.subr.bf16.mxu0 %v1536
        %1759 = vmatpush1.bf16.msra.mxu0 %v1535
        %1760 = vmatprep.subr.bf16.mxu0 %v1540
        %1761 = vmatpush1.bf16.msra.mxu0 %v1539
        %1762 = vmatprep.subr.bf16.mxu0 %v1544
        %1763 = vmatpush1.bf16.msra.mxu0 %v1543
        %1764 = vmatprep.subr.bf16.mxu0 %v1548
        %1765 = vmatpush1.bf16.msra.mxu0 %v1547
        %1766 = vmatprep.subr.bf16.mxu0 %v1552
        %1767 = vmatpush1.bf16.msra.mxu0 %v1551
        %1768 = vmatprep.subr.bf16.mxu0 %v1556
        %1769 = vmatpush1.bf16.msra.mxu0 %v1555
        %1770 = vmatprep.subr.bf16.mxu0 %v1560
        %1771 = vmatpush1.bf16.msra.mxu0 %v1559
        %1772 = vmatprep.subr.bf16.mxu0 %v1564
        %1773 = vmatpush1.bf16.msra.mxu0 %v1563
        %1774 = vmatprep.subr.bf16.mxu0 %v1568
        %1775 = vmatpush1.bf16.msra.mxu0 %v1567
        %1776 = vmatprep.subr.bf16.mxu0 %v1572
        %1777 = vmatpush1.bf16.msra.mxu0 %v1571
        %1778 = vmatprep.subr.bf16.mxu0 %v1576
        %1779 = vmatpush1.bf16.msra.mxu0 %v1575
        %1780 = vmatprep.subr.bf16.mxu0 %v1580
        %1781 = vmatpush1.bf16.msra.mxu0 %v1579
        %1782 = vmatprep.subr.bf16.mxu0 %v1584
        %1783 = vmatpush1.bf16.msra.mxu0 %v1583
        %1784 = vmatprep.subr.bf16.mxu0 %v1588
        %1785 = vmatpush1.bf16.msra.mxu0 %v1587
        %1786 = vmatprep.mubr.bf16.mxu0 %v1234
        %1787 = vmatmul.mubr.bf16.gmra.mrb[0].mxu0 %v1233
        %v1788 = vpop.f32.mrb[0].mxu0
        %v1789 = vadd.f32 %v1324, %v1788
        %v1790 = vpop.f32.mrb[0].mxu0
        %v1791 = vadd.f32 %v1328, %v1790
        %v1792 = vpop.f32.mrb[0].mxu0
        %v1793 = vadd.f32 %v1324, %v1792
        %v1794 = vpop.f32.mrb[0].mxu0
        %v1795 = vadd.f32 %v1328, %v1794
        %1796 = vmatprep.mubr.bf16.mxu0 %v1236
        %1797 = vmatmul.mubr.bf16.gmra.mrb[0].mxu0 %v1235
        %v1798 = vpop.f32.mrb[0].mxu0
        %v1799 = vadd.f32 %v1324, %v1798
        %v1800 = vpop.f32.mrb[0].mxu0
        %v1801 = vadd.f32 %v1328, %v1800
        %v1802 = vpop.f32.mrb[0].mxu0
        %v1803 = vadd.f32 %v1324, %v1802
        %v1804 = vpop.f32.mrb[0].mxu0
        %v1805 = vadd.f32 %v1328, %v1804
        %1806 = vmatprep.mubr.bf16.mxu0 %v1238
        %1807 = vmatmul.mubr.bf16.gmra.mrb[0].mxu0 %v1237
        %v1808 = vpop.f32.mrb[0].mxu0
        %v1809 = vadd.f32 %v1324, %v1808
        %v1810 = vpop.f32.mrb[0].mxu0
        %v1811 = vadd.f32 %v1328, %v1810
        %v1812 = vpop.f32.mrb[0].mxu0
        %v1813 = vadd.f32 %v1324, %v1812
        %v1814 = vpop.f32.mrb[0].mxu0
        %v1815 = vadd.f32 %v1328, %v1814
        %1816 = vmatprep.mubr.bf16.mxu0 %v1240
        %1817 = vmatmul.mubr.bf16.gmra.mrb[0].mxu0 %v1239
        %v1818 = vpop.f32.mrb[0].mxu0
        %v1819 = vadd.f32 %v1324, %v1818
        %v1820 = vpop.f32.mrb[0].mxu0
        %v1821 = vadd.f32 %v1328, %v1820
        %v1822 = vpop.f32.mrb[0].mxu0
        %v1823 = vadd.f32 %v1324, %v1822
        %v1824 = vpop.f32.mrb[0].mxu0
        %v1825 = vadd.f32 %v1328, %v1824
        %1826 = vmatprep.mubr.bf16.mxu0 %v1242
        %1827 = vmatmul.mubr.bf16.gmra.mrb[0].mxu0 %v1241
        %v1828 = vpop.f32.mrb[0].mxu0
        %v1829 = vadd.f32 %v1324, %v1828
        %v1830 = vpop.f32.mrb[0].mxu0
        %v1831 = vadd.f32 %v1328, %v1830
        %v1832 = vpop.f32.mrb[0].mxu0
        %v1833 = vadd.f32 %v1324, %v1832
        %v1834 = vpop.f32.mrb[0].mxu0
        %v1835 = vadd.f32 %v1328, %v1834
        %1836 = vmatprep.mubr.bf16.mxu0 %v1244
        %1837 = vmatmul.mubr.bf16.gmra.mrb[0].mxu0 %v1243
        %v1838 = vpop.f32.mrb[0].mxu0
        %v1839 = vadd.f32 %v1324, %v1838
        %v1840 = vpop.f32.mrb[0].mxu0
        %v1841 = vadd.f32 %v1328, %v1840
        %v1842 = vpop.f32.mrb[0].mxu0
        %v1843 = vadd.f32 %v1324, %v1842
        %v1844 = vpop.f32.mrb[0].mxu0
        %v1845 = vadd.f32 %v1328, %v1844
        %1846 = vmatprep.mubr.bf16.mxu0 %v1246
        %1847 = vmatmul.mubr.bf16.gmra.mrb[0].mxu0 %v1245
        %v1848 = vpop.f32.mrb[0].mxu0
        %v1849 = vadd.f32 %v1324, %v1848
        %v1850 = vpop.f32.mrb[0].mxu0
        %v1851 = vadd.f32 %v1328, %v1850
        %v1852 = vpop.f32.mrb[0].mxu0
        %v1853 = vpop.f32.mrb[0].mxu0
        %1854 = vdwg.mxu0
        %v1855 = vmax.f32 %v1688, 0.0
        %v1856 = vmax.f32 %v1690, 0.0
        %v1857 = vmax.f32 %v1789, 0.0
        %v1858 = vmax.f32 %v1791, 0.0
        %v1859 = vmax.f32 %v1692, 0.0
        %v1860 = vmax.f32 %v1694, 0.0
        %v1861 = vmax.f32 %v1793, 0.0
        %v1862 = vmax.f32 %v1795, 0.0
        %v1863 = vmax.f32 %v1698, 0.0
        %v1864 = vmax.f32 %v1700, 0.0
        %v1865 = vmax.f32 %v1799, 0.0
        %v1866 = vmax.f32 %v1801, 0.0
        %v1867 = vmax.f32 %v1702, 0.0
        %v1868 = vmax.f32 %v1704, 0.0
        %v1869 = vmax.f32 %v1803, 0.0
        %v1870 = vmax.f32 %v1805, 0.0
        %v1871 = vmax.f32 %v1708, 0.0
        %v1872 = vmax.f32 %v1710, 0.0
        %v1873 = vmax.f32 %v1809, 0.0
        %v1874 = vmax.f32 %v1811, 0.0
        %v1875 = vmax.f32 %v1712, 0.0
        %v1876 = vmax.f32 %v1714, 0.0
        %v1877 = vmax.f32 %v1813, 0.0
        %v1878 = vmax.f32 %v1815, 0.0
        %v1879 = vmax.f32 %v1718, 0.0
        %v1880 = vmax.f32 %v1720, 0.0
        %v1881 = vmax.f32 %v1819, 0.0
        %v1882 = vmax.f32 %v1821, 0.0
        %v1883 = vmax.f32 %v1722, 0.0
        %v1884 = vmax.f32 %v1724, 0.0
        %v1885 = vmax.f32 %v1823, 0.0
        %v1886 = vmax.f32 %v1825, 0.0
        %v1887 = vmax.f32 %v1728, 0.0
        %v1888 = vmax.f32 %v1730, 0.0
        %v1889 = vmax.f32 %v1829, 0.0
        %v1890 = vmax.f32 %v1831, 0.0
        %v1891 = vmax.f32 %v1732, 0.0
        %v1892 = vmax.f32 %v1734, 0.0
        %v1893 = vmax.f32 %v1833, 0.0
        %v1894 = vmax.f32 %v1835, 0.0
        %v1895 = vmax.f32 %v1738, 0.0
        %v1896 = vmax.f32 %v1740, 0.0
        %v1897 = vmax.f32 %v1839, 0.0
        %v1898 = vmax.f32 %v1841, 0.0
        %v1899 = vmax.f32 %v1742, 0.0
        %v1900 = vmax.f32 %v1744, 0.0
        %v1901 = vmax.f32 %v1843, 0.0
        %v1902 = vmax.f32 %v1845, 0.0
        %v1903 = vmax.f32 %v1748, 0.0
        %v1904 = vmax.f32 %v1750, 0.0
        %v1905 = vmax.f32 %v1849, 0.0
        %v1906 = vmax.f32 %v1851, 0.0
        %v1907 = vpack.c.bf16 %v1859, %v1855
        %v1908 = vpack.c.bf16 %v1860, %v1856
        %v1909 = vpack.c.bf16 %v1861, %v1857
        %v1910 = vpack.c.bf16 %v1862, %v1858
        %v1911 = vpack.c.bf16 %v1867, %v1863
        %v1912 = vpack.c.bf16 %v1868, %v1864
        %v1913 = vpack.c.bf16 %v1869, %v1865
        %v1914 = vpack.c.bf16 %v1870, %v1866
        %v1915 = vpack.c.bf16 %v1875, %v1871
        %v1916 = vpack.c.bf16 %v1876, %v1872
        %v1917 = vpack.c.bf16 %v1877, %v1873
        %v1918 = vpack.c.bf16 %v1878, %v1874
        %v1919 = vpack.c.bf16 %v1883, %v1879
        %v1920 = vpack.c.bf16 %v1884, %v1880
        %v1921 = vpack.c.bf16 %v1885, %v1881
        %v1922 = vpack.c.bf16 %v1886, %v1882
        %v1923 = vpack.c.bf16 %v1891, %v1887
        %v1924 = vpack.c.bf16 %v1892, %v1888
        %v1925 = vpack.c.bf16 %v1893, %v1889
        %v1926 = vpack.c.bf16 %v1894, %v1890
        %v1927 = vpack.c.bf16 %v1899, %v1895
        %v1928 = vpack.c.bf16 %v1900, %v1896
        %v1929 = vpack.c.bf16 %v1901, %v1897
        %v1930 = vpack.c.bf16 %v1902, %v1898
        %v1931 = vpack.c.bf16 %v1903, %v1903
        %v1932 = vpack.c.bf16 %v1904, %v1904
        %v1933 = vpack.c.bf16 %v1905, %v1905
        %v1934 = vpack.c.bf16 %v1906, %v1906
        %v1935 = vld [vmem:[#allocation5] sm:$0xff]
        %v1936 = vld [vmem:[#allocation5 + $0x8] sm:$0xff]
        %v1937 = vld [vmem:[#allocation5 + $0x10] sm:$0xff]
        %v1938 = vld [vmem:[#allocation5 + $0x18] sm:$0xff]
        %v1939 = vld [vmem:[#allocation5 + $0x20] sm:$0xff]
        %v1940 = vld [vmem:[#allocation5 + $0x28] sm:$0xff]
        %v1941 = vld [vmem:[#allocation5 + $0x30] sm:$0xff]
        %v1942 = vld [vmem:[#allocation5 + $0x38] sm:$0xff]
        %v1943 = vld [vmem:[#allocation5 + $0x40] sm:$0xff]
        %v1944 = vld [vmem:[#allocation5 + $0x48] sm:$0xff]
        %v1945 = vld [vmem:[#allocation5 + $0x50] sm:$0xff]
        %v1946 = vld [vmem:[#allocation5 + $0x58] sm:$0xff]
        %v1947 = vld [vmem:[#allocation5 + $0x60] sm:$0xff]
        %v1948 = vld [vmem:[#allocation5 + $0x68] sm:$0xff]
        %v1949 = vld [vmem:[#allocation5 + $0x70] sm:$0xff]
        %v1950 = vld [vmem:[#allocation5 + $0x78] sm:$0xff]
        %v1951 = vld [vmem:[#allocation5 + $0x80] sm:$0xff]
        %v1952 = vld [vmem:[#allocation5 + $0x88] sm:$0xff]
        %v1953 = vld [vmem:[#allocation5 + $0x90] sm:$0xff]
        %v1954 = vld [vmem:[#allocation5 + $0x98] sm:$0xff]
        %v1955 = vld [vmem:[#allocation5 + $0xa0] sm:$0xff]
        %v1956 = vld [vmem:[#allocation5 + $0xa8] sm:$0xff]
        %v1957 = vld [vmem:[#allocation5 + $0xb0] sm:$0xff]
        %v1958 = vld [vmem:[#allocation5 + $0xb8] sm:$0xff]
        %v1959 = vld [vmem:[#allocation5 + $0xc0] sm:$0xff]
        %v1960 = vld [vmem:[#allocation5 + $0xc8] sm:$0xff]
        %v1961 = vld [vmem:[#allocation5 + $0xd0] sm:$0xff]
        %v1962 = vld [vmem:[#allocation5 + $0xd8] sm:$0xff]
        %v1963 = vld [vmem:[#allocation5 + $0xe0] sm:$0xff]
        %v1964 = vld [vmem:[#allocation5 + $0xe8] sm:$0xff]
        %v1965 = vld [vmem:[#allocation5 + $0xf0] sm:$0xff]
        %v1966 = vld [vmem:[#allocation5 + $0xf8] sm:$0xff]
        %v1967 = vld [vmem:[#allocation5 + $0x100] sm:$0xff]
        %v1968 = vld [vmem:[#allocation5 + $0x108] sm:$0xff]
        %v1969 = vld [vmem:[#allocation5 + $0x110] sm:$0xff]
        %v1970 = vld [vmem:[#allocation5 + $0x118] sm:$0xff]
        %v1971 = vld [vmem:[#allocation5 + $0x120] sm:$0xff]
        %v1972 = vld [vmem:[#allocation5 + $0x128] sm:$0xff]
        %v1973 = vld [vmem:[#allocation5 + $0x130] sm:$0xff]
        %v1974 = vld [vmem:[#allocation5 + $0x138] sm:$0xff]
        %v1975 = vld [vmem:[#allocation5 + $0x140] sm:$0xff]
        %v1976 = vld [vmem:[#allocation5 + $0x148] sm:$0xff]
        %v1977 = vld [vmem:[#allocation5 + $0x150] sm:$0xff]
        %v1978 = vld [vmem:[#allocation5 + $0x158] sm:$0xff]
        %v1979 = vld [vmem:[#allocation5 + $0x160] sm:$0xff]
        %v1980 = vld [vmem:[#allocation5 + $0x168] sm:$0xff]
        %v1981 = vld [vmem:[#allocation5 + $0x170] sm:$0xff]
        %v1982 = vld [vmem:[#allocation5 + $0x178] sm:$0xff]
        %v1983 = vld [vmem:[#allocation5 + $0x180] sm:$0xff]
        %v1984 = vld [vmem:[#allocation5 + $0x188] sm:$0xff]
        %v1985 = vld [vmem:[#allocation5 + $0x190] sm:$0xff]
        %v1986 = vld [vmem:[#allocation5 + $0x198] sm:$0xff]
        %v1987 = vld [vmem:[#allocation5 + $0x1a0] sm:$0xff]
        %v1988 = vld [vmem:[#allocation5 + $0x1a8] sm:$0xff]
        %v1989 = vld [vmem:[#allocation5 + $0x1b0] sm:$0xff]
        %v1990 = vld [vmem:[#allocation5 + $0x1b8] sm:$0xff]
        %v1991 = vld [vmem:[#allocation5 + $0x1c0] sm:$0xff]
        %v1992 = vld [vmem:[#allocation5 + $0x1c8] sm:$0xff]
        %v1993 = vld [vmem:[#allocation5 + $0x1d0] sm:$0xff]
        %v1994 = vld [vmem:[#allocation5 + $0x1d8] sm:$0xff]
        %v1995 = vld [vmem:[#allocation5 + $0x1e0] sm:$0xff]
        %v1996 = vld [vmem:[#allocation5 + $0x1e8] sm:$0xff]
        %v1997 = vld [vmem:[#allocation5 + $0x1f0] sm:$0xff]
        %v1998 = vld [vmem:[#allocation5 + $0x1f8] sm:$0xff]
        %v1999 = vld [vmem:[%s11] sm:$0x3]
        %v2001 = vlaneseq
        %v2002 = vshrl.u32 %v2001, 7
        %v2003 = vsub.s32 0, %v2002
        %v2004 = vrot.slane %v1999, %v2003
        %v2005 = vlaneseq
        %v2006 = vshrl.u32 %v2005, 7
        %v2007 = vsub.s32 1, %v2006
        %v2008 = vrot.slane %v1999, %v2007
        %v2075 = vunpack.c.l.b16 %v1935
        %v2076 = vunpack.c.h.b16 %v1935
        %v2077 = vunpack.c.l.b16 %v1936
        %v2078 = vunpack.c.h.b16 %v1936
        %v2079 = vunpack.c.l.b16 %v1937
        %v2080 = vunpack.c.h.b16 %v1937
        %v2081 = vunpack.c.l.b16 %v1938
        %v2082 = vunpack.c.h.b16 %v1938
        %v2083 = vunpack.c.l.b16 %v1939
        %v2084 = vunpack.c.h.b16 %v1939
        %v2085 = vunpack.c.l.b16 %v1940
        %v2086 = vunpack.c.h.b16 %v1940
        %v2087 = vunpack.c.l.b16 %v1941
        %v2088 = vunpack.c.h.b16 %v1941
        %v2089 = vunpack.c.l.b16 %v1942
        %v2090 = vunpack.c.h.b16 %v1942
        %v2091 = vunpack.c.l.b16 %v1943
        %v2092 = vunpack.c.h.b16 %v1943
        %v2093 = vunpack.c.l.b16 %v1944
        %v2094 = vunpack.c.h.b16 %v1944
        %v2095 = vunpack.c.l.b16 %v1945
        %v2096 = vunpack.c.h.b16 %v1945
        %v2097 = vunpack.c.l.b16 %v1946
        %v2098 = vunpack.c.h.b16 %v1946
        %v2099 = vunpack.c.l.b16 %v1947
        %v2100 = vunpack.c.h.b16 %v1947
        %v2101 = vunpack.c.l.b16 %v1948
        %v2102 = vunpack.c.h.b16 %v1948
        %v2103 = vunpack.c.l.b16 %v1949
        %v2104 = vunpack.c.h.b16 %v1949
        %v2105 = vunpack.c.l.b16 %v1950
        %v2106 = vunpack.c.h.b16 %v1950
        %v2107 = vunpack.c.l.b16 %v1951
        %v2108 = vunpack.c.h.b16 %v1951
        %v2109 = vunpack.c.l.b16 %v1952
        %v2110 = vunpack.c.h.b16 %v1952
        %v2111 = vunpack.c.l.b16 %v1953
        %v2112 = vunpack.c.h.b16 %v1953
        %v2113 = vunpack.c.l.b16 %v1954
        %v2114 = vunpack.c.h.b16 %v1954
        %v2115 = vunpack.c.l.b16 %v1955
        %v2116 = vunpack.c.h.b16 %v1955
        %v2117 = vunpack.c.l.b16 %v1956
        %v2118 = vunpack.c.h.b16 %v1956
        %v2119 = vunpack.c.l.b16 %v1957
        %v2120 = vunpack.c.h.b16 %v1957
        %v2121 = vunpack.c.l.b16 %v1958
        %v2122 = vunpack.c.h.b16 %v1958
        %v2123 = vunpack.c.l.b16 %v1959
        %v2124 = vunpack.c.h.b16 %v1959
        %v2125 = vunpack.c.l.b16 %v1960
        %v2126 = vunpack.c.h.b16 %v1960
        %v2127 = vunpack.c.l.b16 %v1961
        %v2128 = vunpack.c.h.b16 %v1961
        %v2129 = vunpack.c.l.b16 %v1962
        %v2130 = vunpack.c.h.b16 %v1962
        %v2131 = vunpack.c.l.b16 %v1963
        %v2132 = vunpack.c.h.b16 %v1963
        %v2133 = vunpack.c.l.b16 %v1964
        %v2134 = vunpack.c.h.b16 %v1964
        %v2135 = vunpack.c.l.b16 %v1965
        %v2136 = vunpack.c.h.b16 %v1965
        %v2137 = vunpack.c.l.b16 %v1966
        %v2138 = vunpack.c.h.b16 %v1966
        %v2139 = vunpack.c.l.b16 %v1967
        %v2140 = vunpack.c.h.b16 %v1967
        %v2141 = vunpack.c.l.b16 %v1968
        %v2142 = vunpack.c.h.b16 %v1968
        %v2143 = vunpack.c.l.b16 %v1969
        %v2144 = vunpack.c.h.b16 %v1969
        %v2145 = vunpack.c.l.b16 %v1970
        %v2146 = vunpack.c.h.b16 %v1970
        %v2147 = vunpack.c.l.b16 %v1971
        %v2148 = vunpack.c.h.b16 %v1971
        %v2149 = vunpack.c.l.b16 %v1972
        %v2150 = vunpack.c.h.b16 %v1972
        %v2151 = vunpack.c.l.b16 %v1973
        %v2152 = vunpack.c.h.b16 %v1973
        %v2153 = vunpack.c.l.b16 %v1974
        %v2154 = vunpack.c.h.b16 %v1974
        %v2155 = vunpack.c.l.b16 %v1975
        %v2156 = vunpack.c.h.b16 %v1975
        %v2157 = vunpack.c.l.b16 %v1976
        %v2158 = vunpack.c.h.b16 %v1976
        %v2159 = vunpack.c.l.b16 %v1977
        %v2160 = vunpack.c.h.b16 %v1977
        %v2161 = vunpack.c.l.b16 %v1978
        %v2162 = vunpack.c.h.b16 %v1978
        %v2163 = vunpack.c.l.b16 %v1979
        %v2164 = vunpack.c.h.b16 %v1979
        %v2165 = vunpack.c.l.b16 %v1980
        %v2166 = vunpack.c.h.b16 %v1980
        %v2167 = vunpack.c.l.b16 %v1981
        %v2168 = vunpack.c.h.b16 %v1981
        %v2169 = vunpack.c.l.b16 %v1982
        %v2170 = vunpack.c.h.b16 %v1982
        %v2171 = vunpack.c.l.b16 %v1983
        %v2172 = vunpack.c.h.b16 %v1983
        %v2173 = vunpack.c.l.b16 %v1984
        %v2174 = vunpack.c.h.b16 %v1984
        %v2175 = vunpack.c.l.b16 %v1985
        %v2176 = vunpack.c.h.b16 %v1985
        %v2177 = vunpack.c.l.b16 %v1986
        %v2178 = vunpack.c.h.b16 %v1986
        %v2179 = vunpack.c.l.b16 %v1987
        %v2180 = vunpack.c.h.b16 %v1987
        %v2181 = vunpack.c.l.b16 %v1988
        %v2182 = vunpack.c.h.b16 %v1988
        %v2183 = vunpack.c.l.b16 %v1989
        %v2184 = vunpack.c.h.b16 %v1989
        %v2185 = vunpack.c.l.b16 %v1990
        %v2186 = vunpack.c.h.b16 %v1990
        %v2187 = vunpack.c.l.b16 %v1991
        %v2188 = vunpack.c.h.b16 %v1991
        %v2189 = vunpack.c.l.b16 %v1992
        %v2190 = vunpack.c.h.b16 %v1992
        %v2191 = vunpack.c.l.b16 %v1993
        %v2192 = vunpack.c.h.b16 %v1993
        %v2193 = vunpack.c.l.b16 %v1994
        %v2194 = vunpack.c.h.b16 %v1994
        %v2195 = vunpack.c.l.b16 %v1995
        %v2196 = vunpack.c.h.b16 %v1995
        %v2197 = vunpack.c.l.b16 %v1996
        %v2198 = vunpack.c.h.b16 %v1996
        %v2199 = vunpack.c.l.b16 %v1997
        %v2200 = vunpack.c.h.b16 %v1997
        %v2201 = vunpack.c.l.b16 %v1998
        %v2202 = vunpack.c.h.b16 %v1998
        %v2203 = vpack.c.b16 %v2077, %v2075
        %v2204 = vpack.c.b16 %v2078, %v2076
        %v2205 = vpack.c.b16 %v2081, %v2079
        %v2206 = vpack.c.b16 %v2082, %v2080
        %v2207 = vpack.c.b16 %v2085, %v2083
        %v2208 = vpack.c.b16 %v2086, %v2084
        %v2209 = vpack.c.b16 %v2089, %v2087
        %v2210 = vpack.c.b16 %v2090, %v2088
        %v2211 = vpack.c.b16 %v2093, %v2091
        %v2212 = vpack.c.b16 %v2094, %v2092
        %v2213 = vpack.c.b16 %v2097, %v2095
        %v2214 = vpack.c.b16 %v2098, %v2096
        %v2215 = vpack.c.b16 %v2101, %v2099
        %v2216 = vpack.c.b16 %v2102, %v2100
        %v2217 = vpack.c.b16 %v2105, %v2103
        %v2218 = vpack.c.b16 %v2106, %v2104
        %v2219 = vpack.c.b16 %v2109, %v2107
        %v2220 = vpack.c.b16 %v2110, %v2108
        %v2221 = vpack.c.b16 %v2113, %v2111
        %v2222 = vpack.c.b16 %v2114, %v2112
        %v2223 = vpack.c.b16 %v2117, %v2115
        %v2224 = vpack.c.b16 %v2118, %v2116
        %v2225 = vpack.c.b16 %v2121, %v2119
        %v2226 = vpack.c.b16 %v2122, %v2120
        %v2227 = vpack.c.b16 %v2125, %v2123
        %v2228 = vpack.c.b16 %v2126, %v2124
        %v2229 = vpack.c.b16 %v2129, %v2127
        %v2230 = vpack.c.b16 %v2130, %v2128
        %v2231 = vpack.c.b16 %v2133, %v2131
        %v2232 = vpack.c.b16 %v2134, %v2132
        %v2233 = vpack.c.b16 %v2137, %v2135
        %v2234 = vpack.c.b16 %v2138, %v2136
        %v2235 = vpack.c.b16 %v2141, %v2139
        %v2236 = vpack.c.b16 %v2142, %v2140
        %v2237 = vpack.c.b16 %v2145, %v2143
        %v2238 = vpack.c.b16 %v2146, %v2144
        %v2239 = vpack.c.b16 %v2149, %v2147
        %v2240 = vpack.c.b16 %v2150, %v2148
        %v2241 = vpack.c.b16 %v2153, %v2151
        %v2242 = vpack.c.b16 %v2154, %v2152
        %v2243 = vpack.c.b16 %v2157, %v2155
        %v2244 = vpack.c.b16 %v2158, %v2156
        %v2245 = vpack.c.b16 %v2161, %v2159
        %v2246 = vpack.c.b16 %v2162, %v2160
        %v2247 = vpack.c.b16 %v2165, %v2163
        %v2248 = vpack.c.b16 %v2166, %v2164
        %v2249 = vpack.c.b16 %v2169, %v2167
        %v2250 = vpack.c.b16 %v2170, %v2168
        %v2251 = vpack.c.b16 %v2173, %v2171
        %v2252 = vpack.c.b16 %v2174, %v2172
        %v2253 = vpack.c.b16 %v2177, %v2175
        %v2254 = vpack.c.b16 %v2178, %v2176
        %v2255 = vpack.c.b16 %v2181, %v2179
        %v2256 = vpack.c.b16 %v2182, %v2180
        %v2257 = vpack.c.b16 %v2185, %v2183
        %v2258 = vpack.c.b16 %v2186, %v2184
        %v2259 = vpack.c.b16 %v2189, %v2187
        %v2260 = vpack.c.b16 %v2190, %v2188
        %v2261 = vpack.c.b16 %v2193, %v2191
        %v2262 = vpack.c.b16 %v2194, %v2192
        %v2263 = vpack.c.b16 %v2197, %v2195
        %v2264 = vpack.c.b16 %v2198, %v2196
        %v2265 = vpack.c.b16 %v2201, %v2199
        %v2266 = vpack.c.b16 %v2202, %v2200
        %2331 = vmatprep.subr.bf16.mxu0 %v2204
        %2332 = vmatpush1.bf16.msra.mxu0 %v2203
        %2333 = vmatprep.subr.bf16.mxu0 %v2206
        %2334 = vmatpush1.bf16.msra.mxu0 %v2205
        %2335 = vmatprep.subr.bf16.mxu0 %v2208
        %2336 = vmatpush1.bf16.msra.mxu0 %v2207
        %2337 = vmatprep.subr.bf16.mxu0 %v2210
        %2338 = vmatpush1.bf16.msra.mxu0 %v2209
        %2339 = vmatprep.subr.bf16.mxu0 %v2212
        %2340 = vmatpush1.bf16.msra.mxu0 %v2211
        %2341 = vmatprep.subr.bf16.mxu0 %v2214
        %2342 = vmatpush1.bf16.msra.mxu0 %v2213
        %2343 = vmatprep.subr.bf16.mxu0 %v2216
        %2344 = vmatpush1.bf16.msra.mxu0 %v2215
        %2345 = vmatprep.subr.bf16.mxu0 %v2218
        %2346 = vmatpush1.bf16.msra.mxu0 %v2217
        %2347 = vmatprep.subr.bf16.mxu0 %v2220
        %2348 = vmatpush1.bf16.msra.mxu0 %v2219
        %2349 = vmatprep.subr.bf16.mxu0 %v2222
        %2350 = vmatpush1.bf16.msra.mxu0 %v2221
        %2351 = vmatprep.subr.bf16.mxu0 %v2224
        %2352 = vmatpush1.bf16.msra.mxu0 %v2223
        %2353 = vmatprep.subr.bf16.mxu0 %v2226
        %2354 = vmatpush1.bf16.msra.mxu0 %v2225
        %2355 = vmatprep.subr.bf16.mxu0 %v2228
        %2356 = vmatpush1.bf16.msra.mxu0 %v2227
        %2357 = vmatprep.subr.bf16.mxu0 %v2230
        %2358 = vmatpush1.bf16.msra.mxu0 %v2229
        %2359 = vmatprep.subr.bf16.mxu0 %v2232
        %2360 = vmatpush1.bf16.msra.mxu0 %v2231
        %2361 = vmatprep.subr.bf16.mxu0 %v2234
        %2362 = vmatpush1.bf16.msra.mxu0 %v2233
        %2363 = vmatprep.mubr.bf16.mxu0 %v1908
        %2364 = vmatmul.mubr.bf16.gmra.mrb[0].mxu0 %v1907
        %v2365 = vpop.f32.mrb[0].mxu0
        %v2366 = vadd.f32 %v2004, %v2365
        %v2367 = vpop.f32.mrb[0].mxu0
        %v2368 = vadd.f32 %v2008, %v2367
        %v2369 = vpop.f32.mrb[0].mxu0
        %v2370 = vadd.f32 %v2004, %v2369
        %v2371 = vpop.f32.mrb[0].mxu0
        %v2372 = vadd.f32 %v2008, %v2371
        %2373 = vmatprep.mubr.bf16.mxu0 %v1912
        %2374 = vmatmul.mubr.bf16.gmra.mrb[0].mxu0 %v1911
        %v2375 = vpop.f32.mrb[0].mxu0
        %v2376 = vadd.f32 %v2004, %v2375
        %v2377 = vpop.f32.mrb[0].mxu0
        %v2378 = vadd.f32 %v2008, %v2377
        %v2379 = vpop.f32.mrb[0].mxu0
        %v2380 = vadd.f32 %v2004, %v2379
        %v2381 = vpop.f32.mrb[0].mxu0
        %v2382 = vadd.f32 %v2008, %v2381
        %2383 = vmatprep.mubr.bf16.mxu0 %v1916
        %2384 = vmatmul.mubr.bf16.gmra.mrb[0].mxu0 %v1915
        %v2385 = vpop.f32.mrb[0].mxu0
        %v2386 = vadd.f32 %v2004, %v2385
        %v2387 = vpop.f32.mrb[0].mxu0
        %v2388 = vadd.f32 %v2008, %v2387
        %v2389 = vpop.f32.mrb[0].mxu0
        %v2390 = vadd.f32 %v2004, %v2389
        %v2391 = vpop.f32.mrb[0].mxu0
        %v2392 = vadd.f32 %v2008, %v2391
        %2393 = vmatprep.mubr.bf16.mxu0 %v1920
        %2394 = vmatmul.mubr.bf16.gmra.mrb[0].mxu0 %v1919
        %v2395 = vpop.f32.mrb[0].mxu0
        %v2396 = vadd.f32 %v2004, %v2395
        %v2397 = vpop.f32.mrb[0].mxu0
        %v2398 = vadd.f32 %v2008, %v2397
        %v2399 = vpop.f32.mrb[0].mxu0
        %v2400 = vadd.f32 %v2004, %v2399
        %v2401 = vpop.f32.mrb[0].mxu0
        %v2402 = vadd.f32 %v2008, %v2401
        %2403 = vmatprep.mubr.bf16.mxu0 %v1924
        %2404 = vmatmul.mubr.bf16.gmra.mrb[0].mxu0 %v1923
        %v2405 = vpop.f32.mrb[0].mxu0
        %v2406 = vadd.f32 %v2004, %v2405
        %v2407 = vpop.f32.mrb[0].mxu0
        %v2408 = vadd.f32 %v2008, %v2407
        %v2409 = vpop.f32.mrb[0].mxu0
        %v2410 = vadd.f32 %v2004, %v2409
        %v2411 = vpop.f32.mrb[0].mxu0
        %v2412 = vadd.f32 %v2008, %v2411
        %2413 = vmatprep.mubr.bf16.mxu0 %v1928
        %2414 = vmatmul.mubr.bf16.gmra.mrb[0].mxu0 %v1927
        %v2415 = vpop.f32.mrb[0].mxu0
        %v2416 = vadd.f32 %v2004, %v2415
        %v2417 = vpop.f32.mrb[0].mxu0
        %v2418 = vadd.f32 %v2008, %v2417
        %v2419 = vpop.f32.mrb[0].mxu0
        %v2420 = vadd.f32 %v2004, %v2419
        %v2421 = vpop.f32.mrb[0].mxu0
        %v2422 = vadd.f32 %v2008, %v2421
        %2423 = vmatprep.mubr.bf16.mxu0 %v1932
        %2424 = vmatmul.mubr.bf16.gmra.mrb[0].mxu0 %v1931
        %v2425 = vpop.f32.mrb[0].mxu0
        %v2426 = vadd.f32 %v2004, %v2425
        %v2427 = vpop.f32.mrb[0].mxu0
        %v2428 = vadd.f32 %v2008, %v2427
        %v2429 = vpop.f32.mrb[0].mxu0
        %v2430 = vpop.f32.mrb[0].mxu0
        %2431 = vdwg.mxu0
        %2432 = vmatprep.subr.bf16.mxu0 %v2236
        %2433 = vmatpush1.bf16.msra.mxu0 %v2235
        %2434 = vmatprep.subr.bf16.mxu0 %v2238
        %2435 = vmatpush1.bf16.msra.mxu0 %v2237
        %2436 = vmatprep.subr.bf16.mxu0 %v2240
        %2437 = vmatpush1.bf16.msra.mxu0 %v2239
        %2438 = vmatprep.subr.bf16.mxu0 %v2242
        %2439 = vmatpush1.bf16.msra.mxu0 %v2241
        %2440 = vmatprep.subr.bf16.mxu0 %v2244
        %2441 = vmatpush1.bf16.msra.mxu0 %v2243
        %2442 = vmatprep.subr.bf16.mxu0 %v2246
        %2443 = vmatpush1.bf16.msra.mxu0 %v2245
        %2444 = vmatprep.subr.bf16.mxu0 %v2248
        %2445 = vmatpush1.bf16.msra.mxu0 %v2247
        %2446 = vmatprep.subr.bf16.mxu0 %v2250
        %2447 = vmatpush1.bf16.msra.mxu0 %v2249
        %2448 = vmatprep.subr.bf16.mxu0 %v2252
        %2449 = vmatpush1.bf16.msra.mxu0 %v2251
        %2450 = vmatprep.subr.bf16.mxu0 %v2254
        %2451 = vmatpush1.bf16.msra.mxu0 %v2253
        %2452 = vmatprep.subr.bf16.mxu0 %v2256
        %2453 = vmatpush1.bf16.msra.mxu0 %v2255
        %2454 = vmatprep.subr.bf16.mxu0 %v2258
        %2455 = vmatpush1.bf16.msra.mxu0 %v2257
        %2456 = vmatprep.subr.bf16.mxu0 %v2260
        %2457 = vmatpush1.bf16.msra.mxu0 %v2259
        %2458 = vmatprep.subr.bf16.mxu0 %v2262
        %2459 = vmatpush1.bf16.msra.mxu0 %v2261
        %2460 = vmatprep.subr.bf16.mxu0 %v2264
        %2461 = vmatpush1.bf16.msra.mxu0 %v2263
        %2462 = vmatprep.subr.bf16.mxu0 %v2266
        %2463 = vmatpush1.bf16.msra.mxu0 %v2265
        %2464 = vmatprep.mubr.bf16.mxu0 %v1910
        %2465 = vmatmul.mubr.bf16.gmra.mrb[0].mxu0 %v1909
        %v2466 = vpop.f32.mrb[0].mxu0
        %v2467 = vadd.f32 %v2366, %v2466
        %v2468 = vpop.f32.mrb[0].mxu0
        %v2469 = vadd.f32 %v2368, %v2468
        %v2470 = vpop.f32.mrb[0].mxu0
        %v2471 = vadd.f32 %v2370, %v2470
        %v2472 = vpop.f32.mrb[0].mxu0
        %v2473 = vadd.f32 %v2372, %v2472
        %2474 = vmatprep.mubr.bf16.mxu0 %v1914
        %2475 = vmatmul.mubr.bf16.gmra.mrb[0].mxu0 %v1913
        %v2476 = vpop.f32.mrb[0].mxu0
        %v2477 = vadd.f32 %v2376, %v2476
        %v2478 = vpop.f32.mrb[0].mxu0
        %v2479 = vadd.f32 %v2378, %v2478
        %v2480 = vpop.f32.mrb[0].mxu0
        %v2481 = vadd.f32 %v2380, %v2480
        %v2482 = vpop.f32.mrb[0].mxu0
        %v2483 = vadd.f32 %v2382, %v2482
        %2484 = vmatprep.mubr.bf16.mxu0 %v1918
        %2485 = vmatmul.mubr.bf16.gmra.mrb[0].mxu0 %v1917
        %v2486 = vpop.f32.mrb[0].mxu0
        %v2487 = vadd.f32 %v2386, %v2486
        %v2488 = vpop.f32.mrb[0].mxu0
        %v2489 = vadd.f32 %v2388, %v2488
        %v2490 = vpop.f32.mrb[0].mxu0
        %v2491 = vadd.f32 %v2390, %v2490
        %v2492 = vpop.f32.mrb[0].mxu0
        %v2493 = vadd.f32 %v2392, %v2492
        %2494 = vmatprep.mubr.bf16.mxu0 %v1922
        %2495 = vmatmul.mubr.bf16.gmra.mrb[0].mxu0 %v1921
        %v2496 = vpop.f32.mrb[0].mxu0
        %v2497 = vadd.f32 %v2396, %v2496
        %v2498 = vpop.f32.mrb[0].mxu0
        %v2499 = vadd.f32 %v2398, %v2498
        %v2500 = vpop.f32.mrb[0].mxu0
        %v2501 = vadd.f32 %v2400, %v2500
        %v2502 = vpop.f32.mrb[0].mxu0
        %v2503 = vadd.f32 %v2402, %v2502
        %2504 = vmatprep.mubr.bf16.mxu0 %v1926
        %2505 = vmatmul.mubr.bf16.gmra.mrb[0].mxu0 %v1925
        %v2506 = vpop.f32.mrb[0].mxu0
        %v2507 = vadd.f32 %v2406, %v2506
        %v2508 = vpop.f32.mrb[0].mxu0
        %v2509 = vadd.f32 %v2408, %v2508
        %v2510 = vpop.f32.mrb[0].mxu0
        %v2511 = vadd.f32 %v2410, %v2510
        %v2512 = vpop.f32.mrb[0].mxu0
        %v2513 = vadd.f32 %v2412, %v2512
        %2514 = vmatprep.mubr.bf16.mxu0 %v1930
        %2515 = vmatmul.mubr.bf16.gmra.mrb[0].mxu0 %v1929
        %v2516 = vpop.f32.mrb[0].mxu0
        %v2517 = vadd.f32 %v2416, %v2516
        %v2518 = vpop.f32.mrb[0].mxu0
        %v2519 = vadd.f32 %v2418, %v2518
        %v2520 = vpop.f32.mrb[0].mxu0
        %v2521 = vadd.f32 %v2420, %v2520
        %v2522 = vpop.f32.mrb[0].mxu0
        %v2523 = vadd.f32 %v2422, %v2522
        %2524 = vmatprep.mubr.bf16.mxu0 %v1934
        %2525 = vmatmul.mubr.bf16.gmra.mrb[0].mxu0 %v1933
        %v2526 = vpop.f32.mrb[0].mxu0
        %v2527 = vadd.f32 %v2426, %v2526
        %v2528 = vpop.f32.mrb[0].mxu0
        %v2529 = vadd.f32 %v2428, %v2528
        %v2530 = vpop.f32.mrb[0].mxu0
        %v2531 = vpop.f32.mrb[0].mxu0
        %2532 = vdwg.mxu0
        %v2533 = vmax.f32 %v2467, 0.0
        %v2534 = vmax.f32 %v2469, 0.0
        %v2535 = vmax.f32 %v2471, 0.0
        %v2536 = vmax.f32 %v2473, 0.0
        %v2537 = vmax.f32 %v2477, 0.0
        %v2538 = vmax.f32 %v2479, 0.0
        %v2539 = vmax.f32 %v2481, 0.0
        %v2540 = vmax.f32 %v2483, 0.0
        %v2541 = vmax.f32 %v2487, 0.0
        %v2542 = vmax.f32 %v2489, 0.0
        %v2543 = vmax.f32 %v2491, 0.0
        %v2544 = vmax.f32 %v2493, 0.0
        %v2545 = vmax.f32 %v2497, 0.0
        %v2546 = vmax.f32 %v2499, 0.0
        %v2547 = vmax.f32 %v2501, 0.0
        %v2548 = vmax.f32 %v2503, 0.0
        %v2549 = vmax.f32 %v2507, 0.0
        %v2550 = vmax.f32 %v2509, 0.0
        %v2551 = vmax.f32 %v2511, 0.0
        %v2552 = vmax.f32 %v2513, 0.0
        %v2553 = vmax.f32 %v2517, 0.0
        %v2554 = vmax.f32 %v2519, 0.0
        %v2555 = vmax.f32 %v2521, 0.0
        %v2556 = vmax.f32 %v2523, 0.0
        %v2557 = vmax.f32 %v2527, 0.0
        %v2558 = vmax.f32 %v2529, 0.0
        %v2559 = vpack.c.bf16 %v2535, %v2533
        %v2560 = vpack.c.bf16 %v2536, %v2534
        %v2561 = vpack.c.bf16 %v2539, %v2537
        %v2562 = vpack.c.bf16 %v2540, %v2538
        %v2563 = vpack.c.bf16 %v2543, %v2541
        %v2564 = vpack.c.bf16 %v2544, %v2542
        %v2565 = vpack.c.bf16 %v2547, %v2545
        %v2566 = vpack.c.bf16 %v2548, %v2546
        %v2567 = vpack.c.bf16 %v2551, %v2549
        %v2568 = vpack.c.bf16 %v2552, %v2550
        %v2569 = vpack.c.bf16 %v2555, %v2553
        %v2570 = vpack.c.bf16 %v2556, %v2554
        %v2571 = vpack.c.bf16 %v2557, %v2557
        %v2572 = vpack.c.bf16 %v2558, %v2558
        %v2573 = vld [vmem:[#allocation7] sm:$0xf]
        %v2574 = vld [vmem:[#allocation7 + $0x4] sm:$0xf]
        %v2575 = vld [vmem:[#allocation7 + $0x8] sm:$0xf]
        %v2576 = vld [vmem:[#allocation7 + $0xc] sm:$0xf]
        %v2577 = vld [vmem:[#allocation7 + $0x10] sm:$0xf]
        %v2578 = vld [vmem:[#allocation7 + $0x14] sm:$0xf]
        %v2579 = vld [vmem:[#allocation7 + $0x18] sm:$0xf]
        %v2580 = vld [vmem:[#allocation7 + $0x1c] sm:$0xf]
        %v2581 = vld [vmem:[#allocation7 + $0x20] sm:$0xf]
        %v2582 = vld [vmem:[#allocation7 + $0x24] sm:$0xf]
        %v2583 = vld [vmem:[#allocation7 + $0x28] sm:$0xf]
        %v2584 = vld [vmem:[#allocation7 + $0x2c] sm:$0xf]
        %v2585 = vld [vmem:[#allocation7 + $0x30] sm:$0xf]
        %v2586 = vld [vmem:[#allocation7 + $0x34] sm:$0xf]
        %v2587 = vld [vmem:[#allocation7 + $0x38] sm:$0xf]
        %v2588 = vld [vmem:[#allocation7 + $0x3c] sm:$0xf]
        %v2589 = vld [vmem:[#allocation7 + $0x40] sm:$0xf]
        %v2590 = vld [vmem:[#allocation7 + $0x44] sm:$0xf]
        %v2591 = vld [vmem:[#allocation7 + $0x48] sm:$0xf]
        %v2592 = vld [vmem:[#allocation7 + $0x4c] sm:$0xf]
        %v2593 = vld [vmem:[#allocation7 + $0x50] sm:$0xf]
        %v2594 = vld [vmem:[#allocation7 + $0x54] sm:$0xf]
        %v2595 = vld [vmem:[#allocation7 + $0x58] sm:$0xf]
        %v2596 = vld [vmem:[#allocation7 + $0x5c] sm:$0xf]
        %v2597 = vld [vmem:[#allocation7 + $0x60] sm:$0xf]
        %v2598 = vld [vmem:[#allocation7 + $0x64] sm:$0xf]
        %v2599 = vld [vmem:[#allocation7 + $0x68] sm:$0xf]
        %v2600 = vld [vmem:[#allocation7 + $0x6c] sm:$0xf]
        %v2601 = vld [vmem:[#allocation7 + $0x70] sm:$0xf]
        %v2602 = vld [vmem:[#allocation7 + $0x74] sm:$0xf]
        %v2603 = vld [vmem:[#allocation7 + $0x78] sm:$0xf]
        %v2604 = vld [vmem:[#allocation7 + $0x7c] sm:$0xf]
        %v2605 = vld [vmem:[%s12] sm:$0x1]
        %v2607 = vlaneseq
        %v2608 = vshrl.u32 %v2607, 7
        %v2609 = vsub.s32 0, %v2608
        %v2610 = vrot.slane %v2605, %v2609
        %v2644 = vunpack.c.l.b16 %v2573
        %v2645 = vunpack.c.l.b16 %v2574
        %v2646 = vunpack.c.l.b16 %v2575
        %v2647 = vunpack.c.l.b16 %v2576
        %v2648 = vunpack.c.l.b16 %v2577
        %v2649 = vunpack.c.l.b16 %v2578
        %v2650 = vunpack.c.l.b16 %v2579
        %v2651 = vunpack.c.l.b16 %v2580
        %v2652 = vunpack.c.l.b16 %v2581
        %v2653 = vunpack.c.l.b16 %v2582
        %v2654 = vunpack.c.l.b16 %v2583
        %v2655 = vunpack.c.l.b16 %v2584
        %v2656 = vunpack.c.l.b16 %v2585
        %v2657 = vunpack.c.l.b16 %v2586
        %v2658 = vunpack.c.l.b16 %v2587
        %v2659 = vunpack.c.l.b16 %v2588
        %v2660 = vunpack.c.l.b16 %v2589
        %v2661 = vunpack.c.l.b16 %v2590
        %v2662 = vunpack.c.l.b16 %v2591
        %v2663 = vunpack.c.l.b16 %v2592
        %v2664 = vunpack.c.l.b16 %v2593
        %v2665 = vunpack.c.l.b16 %v2594
        %v2666 = vunpack.c.l.b16 %v2595
        %v2667 = vunpack.c.l.b16 %v2596
        %v2668 = vunpack.c.l.b16 %v2597
        %v2669 = vunpack.c.l.b16 %v2598
        %v2670 = vunpack.c.l.b16 %v2599
        %v2671 = vunpack.c.l.b16 %v2600
        %v2672 = vunpack.c.l.b16 %v2601
        %v2673 = vunpack.c.l.b16 %v2602
        %v2674 = vunpack.c.l.b16 %v2603
        %v2675 = vunpack.c.l.b16 %v2604
        %v2676 = vpack.c.b16 %v2645, %v2644
        %v2677 = vpack.c.b16 %v2647, %v2646
        %v2678 = vpack.c.b16 %v2649, %v2648
        %v2679 = vpack.c.b16 %v2651, %v2650
        %v2680 = vpack.c.b16 %v2653, %v2652
        %v2681 = vpack.c.b16 %v2655, %v2654
        %v2682 = vpack.c.b16 %v2657, %v2656
        %v2683 = vpack.c.b16 %v2659, %v2658
        %v2684 = vpack.c.b16 %v2661, %v2660
        %v2685 = vpack.c.b16 %v2663, %v2662
        %v2686 = vpack.c.b16 %v2665, %v2664
        %v2687 = vpack.c.b16 %v2667, %v2666
        %v2688 = vpack.c.b16 %v2669, %v2668
        %v2689 = vpack.c.b16 %v2671, %v2670
        %v2690 = vpack.c.b16 %v2673, %v2672
        %v2691 = vpack.c.b16 %v2675, %v2674
        %2708 = vmatprep.subr.bf16.mxu0 0
        %2709 = vmatpush1.bf16.msra.mxu0 %v2676
        %2710 = vmatprep.subr.bf16.mxu0 0
        %2711 = vmatpush1.bf16.msra.mxu0 %v2677
        %2712 = vmatprep.subr.bf16.mxu0 0
        %2713 = vmatpush1.bf16.msra.mxu0 %v2678
        %2714 = vmatprep.subr.bf16.mxu0 0
        %2715 = vmatpush1.bf16.msra.mxu0 %v2679
        %2716 = vmatprep.subr.bf16.mxu0 0
        %2717 = vmatpush1.bf16.msra.mxu0 %v2680
        %2718 = vmatprep.subr.bf16.mxu0 0
        %2719 = vmatpush1.bf16.msra.mxu0 %v2681
        %2720 = vmatprep.subr.bf16.mxu0 0
        %2721 = vmatpush1.bf16.msra.mxu0 %v2682
        %2722 = vmatprep.subr.bf16.mxu0 0
        %2723 = vmatpush1.bf16.msra.mxu0 %v2683
        %2724 = vmatprep.subr.bf16.mxu0 0
        %2725 = vmatpush1.bf16.msra.mxu0 %v2684
        %2726 = vmatprep.subr.bf16.mxu0 0
        %2727 = vmatpush1.bf16.msra.mxu0 %v2685
        %2728 = vmatprep.subr.bf16.mxu0 0
        %2729 = vmatpush1.bf16.msra.mxu0 %v2686
        %2730 = vmatprep.subr.bf16.mxu0 0
        %2731 = vmatpush1.bf16.msra.mxu0 %v2687
        %2732 = vmatprep.subr.bf16.mxu0 0
        %2733 = vmatpush1.bf16.msra.mxu0 %v2688
        %2734 = vmatprep.subr.bf16.mxu0 0
        %2735 = vmatpush1.bf16.msra.mxu0 %v2689
        %2736 = vmatprep.subr.bf16.mxu0 0
        %2737 = vmatpush1.bf16.msra.mxu0 %v2690
        %2738 = vmatprep.subr.bf16.mxu0 0
        %2739 = vmatpush1.bf16.msra.mxu0 %v2691
        %2740 = vmatprep.mubr.bf16.mxu0 %v2560
        %2741 = vmatmul.mubr.bf16.gmra.mrb[0].mxu0 %v2559
        %v2742 = vpop.f32.mrb[0].mxu0
        %v2743 = vadd.f32 %v2610, %v2742
        %v2744 = vpop.f32.mrb[0].mxu0
        %v2745 = vpop.f32.mrb[0].mxu0
        %v2746 = vadd.f32 %v2610, %v2745
        %v2747 = vpop.f32.mrb[0].mxu0
        %2748 = vmatprep.mubr.bf16.mxu0 %v2562
        %2749 = vmatmul.mubr.bf16.gmra.mrb[0].mxu0 %v2561
        %v2750 = vpop.f32.mrb[0].mxu0
        %v2751 = vadd.f32 %v2610, %v2750
        %v2752 = vpop.f32.mrb[0].mxu0
        %v2753 = vpop.f32.mrb[0].mxu0
        %v2754 = vadd.f32 %v2610, %v2753
        %v2755 = vpop.f32.mrb[0].mxu0
        %2756 = vmatprep.mubr.bf16.mxu0 %v2564
        %2757 = vmatmul.mubr.bf16.gmra.mrb[0].mxu0 %v2563
        %v2758 = vpop.f32.mrb[0].mxu0
        %v2759 = vadd.f32 %v2610, %v2758
        %v2760 = vpop.f32.mrb[0].mxu0
        %v2761 = vpop.f32.mrb[0].mxu0
        %v2762 = vadd.f32 %v2610, %v2761
        %v2763 = vpop.f32.mrb[0].mxu0
        %2764 = vmatprep.mubr.bf16.mxu0 %v2566
        %2765 = vmatmul.mubr.bf16.gmra.mrb[0].mxu0 %v2565
        %v2766 = vpop.f32.mrb[0].mxu0
        %v2767 = vadd.f32 %v2610, %v2766
        %v2768 = vpop.f32.mrb[0].mxu0
        %v2769 = vpop.f32.mrb[0].mxu0
        %v2770 = vadd.f32 %v2610, %v2769
        %v2771 = vpop.f32.mrb[0].mxu0
        %2772 = vmatprep.mubr.bf16.mxu0 %v2568
        %2773 = vmatmul.mubr.bf16.gmra.mrb[0].mxu0 %v2567
        %v2774 = vpop.f32.mrb[0].mxu0
        %v2775 = vadd.f32 %v2610, %v2774
        %v2776 = vpop.f32.mrb[0].mxu0
        %v2777 = vpop.f32.mrb[0].mxu0
        %v2778 = vadd.f32 %v2610, %v2777
        %v2779 = vpop.f32.mrb[0].mxu0
        %2780 = vmatprep.mubr.bf16.mxu0 %v2570
        %2781 = vmatmul.mubr.bf16.gmra.mrb[0].mxu0 %v2569
        %v2782 = vpop.f32.mrb[0].mxu0
        %v2783 = vadd.f32 %v2610, %v2782
        %v2784 = vpop.f32.mrb[0].mxu0
        %v2785 = vpop.f32.mrb[0].mxu0
        %v2786 = vadd.f32 %v2610, %v2785
        %v2787 = vpop.f32.mrb[0].mxu0
        %2788 = vmatprep.mubr.bf16.mxu0 %v2572
        %2789 = vmatmul.mubr.bf16.gmra.mrb[0].mxu0 %v2571
        %v2790 = vpop.f32.mrb[0].mxu0
        %v2791 = vadd.f32 %v2610, %v2790
        %v2792 = vpop.f32.mrb[0].mxu0
        %v2793 = vpop.f32.mrb[0].mxu0
        %v2794 = vpop.f32.mrb[0].mxu0
        %2795 = vdwg.mxu0
        %s2796 = sadd.s32 %s35, %s36
        %s2797 = smul.u32 %s2796, 104
        %s2798 = sadd.s32 %s2797, 104
        %p2799 = scmp.gt.s32.totalorder %s2798, 100
        // Predicated region
        $region85: #{tpu_custom_call.1} parent=71 // pred_check
          %p2800 = pneg %p2799
        $region86: #{tpu_custom_call.1} parent=71 // pred_check_branch
          %2802 = sbr.rel (%p2800) target = $region88
        $region87: #{tpu_custom_call.1} parent=71 // pred_region
          %v2803 = vlaneseq
          %v2804 = vshrl.u32 %v2803, 7
          %v2805 = vadd.s32 %v2804, 8
          %v2806 = vadd.s32 %v2804, 16
          %v2807 = vadd.s32 %v2804, 24
          %v2808 = vadd.s32 %v2804, 32
          %v2809 = vadd.s32 %v2804, 40
          %v2810 = vadd.s32 %v2804, 48
          %v2811 = vadd.s32 %v2804, 56
          %v2812 = vadd.s32 %v2804, 64
          %v2813 = vadd.s32 %v2804, 72
          %v2814 = vadd.s32 %v2804, 80
          %v2815 = vadd.s32 %v2804, 88
          %v2816 = vadd.s32 %v2804, 96
          %v2817 = vstv %s2797
          %v2818 = vadd.s32 %v2817, %v2804
          %v2819 = vadd.s32 %v2817, %v2805
          %v2820 = vadd.s32 %v2817, %v2806
          %v2821 = vadd.s32 %v2817, %v2807
          %v2822 = vadd.s32 %v2817, %v2808
          %v2823 = vadd.s32 %v2817, %v2809
          %v2824 = vadd.s32 %v2817, %v2810
          %v2825 = vadd.s32 %v2817, %v2811
          %v2826 = vadd.s32 %v2817, %v2812
          %v2827 = vadd.s32 %v2817, %v2813
          %v2828 = vadd.s32 %v2817, %v2814
          %v2829 = vadd.s32 %v2817, %v2815
          %v2830 = vadd.s32 %v2817, %v2816
          %vm2831 = vcmp.lt.s32.totalorder %v2818, 100
          %vm2832 = vcmp.lt.s32.totalorder %v2819, 100
          %vm2833 = vcmp.lt.s32.totalorder %v2820, 100
          %vm2834 = vcmp.lt.s32.totalorder %v2821, 100
          %vm2835 = vcmp.lt.s32.totalorder %v2822, 100
          %vm2836 = vcmp.lt.s32.totalorder %v2823, 100
          %vm2837 = vcmp.lt.s32.totalorder %v2824, 100
          %vm2838 = vcmp.lt.s32.totalorder %v2825, 100
          %vm2839 = vcmp.lt.s32.totalorder %v2826, 100
          %vm2840 = vcmp.lt.s32.totalorder %v2827, 100
          %vm2841 = vcmp.lt.s32.totalorder %v2828, 100
          %vm2842 = vcmp.lt.s32.totalorder %v2829, 100
          %vm2843 = vcmp.lt.s32.totalorder %v2830, 100
          %v2844 = vsel %vm2831, 1, 0
          %v2845 = vsel %vm2832, 1, 0
          %v2846 = vsel %vm2833, 1, 0
          %v2847 = vsel %vm2834, 1, 0
          %v2848 = vsel %vm2835, 1, 0
          %v2849 = vsel %vm2836, 1, 0
          %v2850 = vsel %vm2837, 1, 0
          %v2851 = vsel %vm2838, 1, 0
          %v2852 = vsel %vm2839, 1, 0
          %v2853 = vsel %vm2840, 1, 0
          %v2854 = vsel %vm2841, 1, 0
          %v2855 = vsel %vm2842, 1, 0
          %v2856 = vsel %vm2843, 1, 0
          %vm2857 = vcmp.eq.s32.totalorder %v2844, 1
          %vm2858 = vcmp.eq.s32.totalorder %v2845, 1
          %vm2859 = vcmp.eq.s32.totalorder %v2846, 1
          %vm2860 = vcmp.eq.s32.totalorder %v2847, 1
          %vm2861 = vcmp.eq.s32.totalorder %v2848, 1
          %vm2862 = vcmp.eq.s32.totalorder %v2849, 1
          %vm2863 = vcmp.eq.s32.totalorder %v2850, 1
          %vm2864 = vcmp.eq.s32.totalorder %v2851, 1
          %vm2865 = vcmp.eq.s32.totalorder %v2852, 1
          %vm2866 = vcmp.eq.s32.totalorder %v2853, 1
          %vm2867 = vcmp.eq.s32.totalorder %v2854, 1
          %vm2868 = vcmp.eq.s32.totalorder %v2855, 1
          %vm2869 = vcmp.eq.s32.totalorder %v2856, 1
          %v2870 = vsel %vm2857, %v2743, -inf
          %v2871 = vsel %vm2858, %v2746, -inf
          %v2872 = vsel %vm2859, %v2751, -inf
          %v2873 = vsel %vm2860, %v2754, -inf
          %v2874 = vsel %vm2861, %v2759, -inf
          %v2875 = vsel %vm2862, %v2762, -inf
          %v2876 = vsel %vm2863, %v2767, -inf
          %v2877 = vsel %vm2864, %v2770, -inf
          %v2878 = vsel %vm2865, %v2775, -inf
          %v2879 = vsel %vm2866, %v2778, -inf
          %v2880 = vsel %vm2867, %v2783, -inf
          %v2881 = vsel %vm2868, %v2786, -inf
          %v2882 = vsel %vm2869, %v2791, -inf
          %v2883 = vmax.f32 %v2870, %v2874
          %v2884 = vmax.f32 %v2871, %v2875
          %v2885 = vmax.f32 %v2872, %v2876
          %v2886 = vmax.f32 %v2873, %v2877
          %v2887 = vmax.f32 %v2883, %v2878
          %v2888 = vmax.f32 %v2884, %v2879
          %v2889 = vmax.f32 %v2885, %v2880
          %v2890 = vmax.f32 %v2886, %v2881
          %v2891 = vmax.f32 %v2887, %v2882
          %v2892 = vmax.f32 %v2891, %v2888
          %v2893 = vmax.f32 %v2889, %v2890
          %v2894 = vmax.f32 %v2892, %v2893
          %v2895 = vrot.slane %v2894, 4
          %v2896 = vmax.f32 %v2894, %v2895
          %v2897 = vrot.slane %v2896, 2
          %v2898 = vmax.f32 %v2896, %v2897
          %v2899 = vrot.slane %v2898, 1
          %v2900 = vmax.f32 %v2898, %v2899
          %p2901 = scmp.eq.s32.totalorder %s36, 0
          // Predicated region
          $region89: #{tpu_custom_call.1} parent=87 // pred_check
            %p2902 = pneg %p2901
          $region90: #{tpu_custom_call.1} parent=87 // pred_check_branch
            %2904 = sbr.rel (%p2902) target = $region92
          $region91: #{tpu_custom_call.1} parent=87 // pred_region
            %2905 = vst [vmem:[%s513] sm:$0x1] %v2900
          $region92: #{tpu_custom_call.1} parent=87 // pred_fallthru
            _
          %p2906 = scmp.gt.s32.totalorder %s36, 0
          // Predicated region
          $region93: #{tpu_custom_call.1} parent=87 // pred_check
            %p2907 = pneg %p2906
          $region94: #{tpu_custom_call.1} parent=87 // pred_check_branch
            %2909 = sbr.rel (%p2907) target = $region96
          $region95: #{tpu_custom_call.1} parent=87 // pred_region
            %v2910 = vld [vmem:[%s513] sm:$0x1]
            %v2911 = vmax.f32 %v2910, %v2900
            %2912 = vst [vmem:[%s513] sm:$0x1] %v2911
          $region96: #{tpu_custom_call.1} parent=87 // pred_fallthru
            _
        $region88: #{tpu_custom_call.1} parent=71 // pred_fallthru
          _
        %p2913 = scmp.le.s32.totalorder %s2798, 100
        // Predicated region
        $region97: #{tpu_custom_call.1} parent=71 // pred_check
          %p2914 = pneg %p2913
        $region98: #{tpu_custom_call.1} parent=71 // pred_check_branch
          %2916 = sbr.rel (%p2914) target = $region100
        $region99: #{tpu_custom_call.1} parent=71 // pred_region
          %v2917 = vmax.f32 %v2743, %v2759
          %v2918 = vmax.f32 %v2746, %v2762
          %v2919 = vmax.f32 %v2751, %v2767
          %v2920 = vmax.f32 %v2754, %v2770
          %v2921 = vmax.f32 %v2917, %v2775
          %v2922 = vmax.f32 %v2918, %v2778
          %v2923 = vmax.f32 %v2919, %v2783
          %v2924 = vmax.f32 %v2920, %v2786
          %v2925 = vmax.f32 %v2921, %v2791
          %v2926 = vmax.f32 %v2925, %v2922
          %v2927 = vmax.f32 %v2923, %v2924
          %v2928 = vmax.f32 %v2926, %v2927
          %v2929 = vrot.slane %v2928, 4
          %v2930 = vmax.f32 %v2928, %v2929
          %v2931 = vrot.slane %v2930, 2
          %v2932 = vmax.f32 %v2930, %v2931
          %v2933 = vrot.slane %v2932, 1
          %v2934 = vmax.f32 %v2932, %v2933
          %p2935 = scmp.eq.s32.totalorder %s36, 0
          // Predicated region
          $region101: #{tpu_custom_call.1} parent=99 // pred_check
            %p2936 = pneg %p2935
          $region102: #{tpu_custom_call.1} parent=99 // pred_check_branch
            %2938 = sbr.rel (%p2936) target = $region104
          $region103: #{tpu_custom_call.1} parent=99 // pred_region
            %2939 = vst [vmem:[%s513] sm:$0x1] %v2934
          $region104: #{tpu_custom_call.1} parent=99 // pred_fallthru
            _
          %p2940 = scmp.gt.s32.totalorder %s36, 0
          // Predicated region
          $region105: #{tpu_custom_call.1} parent=99 // pred_check
            %p2941 = pneg %p2940
          $region106: #{tpu_custom_call.1} parent=99 // pred_check_branch
            %2943 = sbr.rel (%p2941) target = $region108
          $region107: #{tpu_custom_call.1} parent=99 // pred_region
            %v2944 = vld [vmem:[%s513] sm:$0x1]
            %v2945 = vmax.f32 %v2944, %v2934
            %2946 = vst [vmem:[%s513] sm:$0x1] %v2945
          $region108: #{tpu_custom_call.1} parent=99 // pred_fallthru
            _
        $region100: #{tpu_custom_call.1} parent=71 // pred_fallthru
          _
        %s2947 = sand.u32 %s340, 1
        %s2948 = scalar_lea.sflag [#allocation4], %s2947
        %s2949 = sand.u32 %s340, 1
        %s2950 = scalar_lea.vmem [#allocation8], %s2949
        // Predicated region
        $region109: #{tpu_custom_call.1} parent=71 // pred_check
          %p2951 = pneg %p350
        $region110: #{tpu_custom_call.1} parent=71 // pred_check_branch
          %2953 = sbr.rel (%p2951) target = $region112
        $region111: #{tpu_custom_call.1} parent=71 // pred_region
          %s2955 = ssub.s32 16, 16
          %2956 = vsyncadd %s2948, %s2955
          %s2957 = sadd.s32 %s35, %s34
          %s2958 = smul.addr %s2957, 16
          %s2959 = scalar_lea.hbm %s13, %s2958
          %s2961 = sshll.u32 %s2950, 4
          %s2962 = int_to_ptr.vmem [resolvable:$true] %s2961
          %2964 = dma.vmem_to_hbm [thread:$0]  %s2962, 16, %s2959, %s2948
        $region112: #{tpu_custom_call.1} parent=71 // pred_fallthru
          _
      $region72: #{tpu_custom_call.1} parent=5 // pred_fallthru
        _
      %p2965 = scmp.le.s32.totalorder 2, %s24
      // Predicated region
      $region113: #{tpu_custom_call.1} parent=5 // pred_check
        %p2966 = pneg %p2965
      $region114: #{tpu_custom_call.1} parent=5 // pred_check_branch
        %2968 = sbr.rel (%p2966) target = $region116
      $region115: #{tpu_custom_call.1} parent=5 // pred_region
        %s2969 = ssub.s32 %s24, 2
        // Predicated region
        $region117: #{tpu_custom_call.1} parent=115 // pred_check
          %p2970 = pneg %p356
        $region118: #{tpu_custom_call.1} parent=115 // pred_check_branch
          %2972 = sbr.rel (%p2970) target = $region120
        $region119: #{tpu_custom_call.1} parent=115 // pred_region
          %s2973 = sand.u32 %s341, 1
          %s2974 = scalar_lea.sflag [#allocation4], %s2973
          %s2975 = sand.u32 %s341, 1
          %s2976 = scalar_lea.vmem [#allocation8], %s2975
          %2977 = dma.done %s2974, 16
        $region120: #{tpu_custom_call.1} parent=115 // pred_fallthru
          _
      $region116: #{tpu_custom_call.1} parent=5 // pred_fallthru
        _
    $region6: #{tpu_custom_call.1} parent=1 // loop_footer
      %s28 = sadd.s32 1, %s24
    $region7: #{tpu_custom_call.1} parent=1 // loop_footer_branch
      %23 = sbr.rel target = $region3
    $region8: #{tpu_custom_call.1} parent=1 // loop_exit
      _
    %2978 = vsyncpa [#allocation3], 1
    %s2979 = scalar_lea.sflag [#allocation3], 1
    %2980 = vsyncpa %s2979, 1
    %2981 = vsyncpa [#allocation6], 1
    %2982 = vsyncpa [#allocation4], 1
    %s2983 = scalar_lea.sflag [#allocation4], 1
    %2984 = vsyncpa %s2983, 1

</llo_original>
